<compile_context>
chip_gen: v6e
topology: v6e:2x2x1
jax: 0.10.0
libtpu: 0.0.40
codegen_flags: <defaults>
</compile_context>

<pallas_src>
import functools
import math

import jax
import jax.numpy as jnp
from jax import lax
from jax.experimental import pallas as pl
from jax.experimental.pallas import tpu as pltpu

EPS = 1e-5
NEG_INF = -1e30

# Default tile sizes (bf16 operands).  Sized so live VMEM per kernel stays in
# the few-MiB range with double buffering -> fits v7x's 64 MiB VMEM and is
# 128/256-aligned for the v5e/v6e/v7x MXU geometries.
TM, TN, TK = 256, 512, 512
TQ, TKV = 128, 128
VMEM_LIMIT = 64 * 1024 * 1024


def _pick_tile(dim, preferred, align):
    """Largest tile <= preferred that divides dim and is `align`-aligned
    (or the full dim, which is always legal for a BlockSpec)."""
    if dim <= preferred:
        return dim
    t = (preferred // align) * align
    while t >= align:
        if dim % t == 0:
            return t
        t -= align
    return dim


# ----------------------------- Pallas kernels ------------------------------ #

def rmsnorm_matmul_kernel(x_ref, g_ref, w_ref, o_ref):
    """o = RMSNorm(x) @ W on a (tm, K) x (K, tn) tile.  Norm in f32, dot in
    bf16 with f32 accumulation."""
    xf = x_ref[...].astype(jnp.float32)
    ms = jnp.mean(xf * xf, axis=-1, keepdims=True)
    xn = (xf * lax.rsqrt(ms + EPS) * g_ref[...]).astype(w_ref.dtype)
    o_ref[...] = jnp.dot(xn, w_ref[...],
                         preferred_element_type=jnp.float32).astype(o_ref.dtype)


def matmul_residual_kernel(y_ref, w_ref, res_ref, o_ref, acc_ref):
    """o = res + y @ W with a K-reduction grid axis (P3 accumulator)."""
    @pl.when(pl.program_id(2) == 0)
    def _():
        acc_ref[...] = jnp.zeros_like(acc_ref)

    acc_ref[...] += jnp.dot(y_ref[...], w_ref[...],
                            preferred_element_type=jnp.float32)

    @pl.when(pl.program_id(2) == pl.num_programs(2) - 1)
    def _():
        o_ref[...] = (res_ref[...].astype(jnp.float32)
                      + acc_ref[...]).astype(o_ref.dtype)


def swiglu_matmul_residual_kernel(h1_ref, h3_ref, w2_ref, res_ref, o_ref, acc_ref):
    """o = res + (silu(h1) * h3) @ W2, SwiGLU fused into the matmul tiles."""
    @pl.when(pl.program_id(2) == 0)
    def _():
        acc_ref[...] = jnp.zeros_like(acc_ref)

    h1 = h1_ref[...].astype(jnp.float32)
    h3 = h3_ref[...].astype(jnp.float32)
    a = (h1 * jax.nn.sigmoid(h1) * h3).astype(w2_ref.dtype)
    acc_ref[...] += jnp.dot(a, w2_ref[...], preferred_element_type=jnp.float32)

    @pl.when(pl.program_id(2) == pl.num_programs(2) - 1)
    def _():
        o_ref[...] = (res_ref[...].astype(jnp.float32)
                      + acc_ref[...]).astype(o_ref.dtype)


def rope_half_kernel(cos_ref, sin_ref, x_ref, o_ref):
    """RoPE on half-layout q/k tiles: x = [x1 | x2] per head, HS on lanes.
    Pure VPU multiplies (cos/sin are only (tt, HS/2))."""
    half = cos_ref.shape[-1]
    x = x_ref[...].astype(jnp.float32)          # (1, tt, HS)
    x1 = x[:, :, :half]
    x2 = x[:, :, half:]
    cos = cos_ref[...]                          # (tt, half) broadcasts over dim 0
    sin = sin_ref[...]
    o_ref[:, :, :half] = (x1 * cos - x2 * sin).astype(o_ref.dtype)
    o_ref[:, :, half:] = (x2 * cos + x1 * sin).astype(o_ref.dtype)


def flash_attn_kernel(q_ref, k_ref, v_ref, o_ref, m_sc, l_sc, acc_sc,
                      *, tq, tkv, scale):
    """Flash attention for one (batch*head, q-tile) with online softmax over
    KV tiles.  Fully-masked (upper-triangular) KV tiles are skipped."""
    qi = pl.program_id(1)
    ki = pl.program_id(2)

    @pl.when(ki == 0)
    def _():
        m_sc[...] = jnp.full_like(m_sc, -jnp.inf)
        l_sc[...] = jnp.zeros_like(l_sc)
        acc_sc[...] = jnp.zeros_like(acc_sc)

    @pl.when(ki * tkv < (qi + 1) * tq)          # skip fully-masked KV tiles
    def _():
        s = jnp.einsum('bqd,bkd->bqk', q_ref[...], k_ref[...],
                       preferred_element_type=jnp.float32) * scale
        row = lax.broadcasted_iota(jnp.int32, s.shape, 1) + qi * tq
        col = lax.broadcasted_iota(jnp.int32, s.shape, 2) + ki * tkv
        s = jnp.where(row >= col, s, NEG_INF)
        m_prev = m_sc[...]
        m_new = jnp.maximum(m_prev, s.max(axis=-1, keepdims=True))
        alpha = jnp.exp(m_prev - m_new)
        p = jnp.exp(s - m_new)
        l_sc[...] = alpha * l_sc[...] + p.sum(axis=-1, keepdims=True)
        acc_sc[...] = alpha * acc_sc[...] + jnp.einsum(
            'bqk,bkd->bqd', p.astype(v_ref.dtype), v_ref[...],
            preferred_element_type=jnp.float32)
        m_sc[...] = m_new

    @pl.when(ki == pl.num_programs(2) - 1)
    def _():
        inv_l = pl.reciprocal(l_sc[...], approx=True)
        o_ref[...] = (acc_sc[...] * inv_l).astype(o_ref.dtype)


# ------------------------------ kernel wrappers ----------------------------- #

def rmsnorm_matmul(x, g, w, out_dtype, *, tm=TM, tn=TN):
    M, K = x.shape
    _, N = w.shape
    tm = _pick_tile(M, tm, 8)
    tn = _pick_tile(N, tn, 128)
    cost = pl.CostEstimate(
        flops=2 * M * N * K + 4 * M * K,
        transcendentals=M * (N // tn),
        bytes_accessed=(M * K + K * N) * 2 + M * N * jnp.dtype(out_dtype).itemsize)
    return pl.pallas_call(
        rmsnorm_matmul_kernel,
        out_shape=jax.ShapeDtypeStruct((M, N), out_dtype),
        grid_spec=pltpu.PrefetchScalarGridSpec(
            num_scalar_prefetch=0,
            grid=(M // tm, N // tn),
            in_specs=[pl.BlockSpec((tm, K), lambda i, j: (i, 0)),
                      pl.BlockSpec((1, K), lambda i, j: (0, 0)),
                      pl.BlockSpec((K, tn), lambda i, j: (0, j))],
            out_specs=pl.BlockSpec((tm, tn), lambda i, j: (i, j))),
        compiler_params=pltpu.CompilerParams(
            dimension_semantics=("parallel", "parallel"),
            vmem_limit_bytes=VMEM_LIMIT),
        cost_estimate=cost,
    )(x, g, w)


def matmul_residual(y, w, res, *, tm=TM, tn=TN, tk=TK):
    M, K = y.shape
    _, N = w.shape
    tm = _pick_tile(M, tm, 8)
    tn = _pick_tile(N, tn, 128)
    tk = _pick_tile(K, tk, 128)
    cost = pl.CostEstimate(flops=2 * M * N * K, transcendentals=0,
                           bytes_accessed=(M * K + K * N + 2 * M * N) * 2)
    return pl.pallas_call(
        matmul_residual_kernel,
        out_shape=jax.ShapeDtypeStruct((M, N), res.dtype),
        grid_spec=pltpu.PrefetchScalarGridSpec(
            num_scalar_prefetch=0,
            grid=(M // tm, N // tn, K // tk),
            in_specs=[pl.BlockSpec((tm, tk), lambda i, j, k: (i, k)),
                      pl.BlockSpec((tk, tn), lambda i, j, k: (k, j)),
                      pl.BlockSpec((tm, tn), lambda i, j, k: (i, j))],
            out_specs=pl.BlockSpec((tm, tn), lambda i, j, k: (i, j)),
            scratch_shapes=[pltpu.VMEM((tm, tn), jnp.float32)]),
        compiler_params=pltpu.CompilerParams(
            dimension_semantics=("parallel", "parallel", "arbitrary"),
            vmem_limit_bytes=VMEM_LIMIT),
        input_output_aliases={2: 0},            # residual written in place
        cost_estimate=cost,
    )(y, w, res)


def swiglu_matmul_residual(h13, w2, res, *, tm=TM, tn=TN, tk=TK):
    M, _ = h13.shape
    K, N = w2.shape                             # K = hidden, h13 is (M, 2K)
    tm = _pick_tile(M, tm, 8)
    tn = _pick_tile(N, tn, 128)
    tk = _pick_tile(K, tk, 128)
    koff = K // tk                              # block offset of the w3 half
    cost = pl.CostEstimate(flops=2 * M * N * K + 6 * M * K * (N // tn),
                           transcendentals=M * K * (N // tn),
                           bytes_accessed=(2 * M * K + K * N + 2 * M * N) * 2)
    return pl.pallas_call(
        swiglu_matmul_residual_kernel,
        out_shape=jax.ShapeDtypeStruct((M, N), res.dtype),
        grid_spec=pltpu.PrefetchScalarGridSpec(
            num_scalar_prefetch=0,
            grid=(M // tm, N // tn, K // tk),
            in_specs=[pl.BlockSpec((tm, tk), lambda i, j, k: (i, k)),
                      pl.BlockSpec((tm, tk), lambda i, j, k: (i, k + koff)),
                      pl.BlockSpec((tk, tn), lambda i, j, k: (k, j)),
                      pl.BlockSpec((tm, tn), lambda i, j, k: (i, j))],
            out_specs=pl.BlockSpec((tm, tn), lambda i, j, k: (i, j)),
            scratch_shapes=[pltpu.VMEM((tm, tn), jnp.float32)]),
        compiler_params=pltpu.CompilerParams(
            dimension_semantics=("parallel", "parallel", "arbitrary"),
            vmem_limit_bytes=VMEM_LIMIT),
        input_output_aliases={3: 0},            # residual written in place
        cost_estimate=cost,
    )(h13, h13, w2, res)


def apply_rope_half(x, cos, sin, *, t_rows=256):
    BH, T, HS = x.shape
    tt = _pick_tile(T, t_rows, 8)
    return pl.pallas_call(
        rope_half_kernel,
        out_shape=jax.ShapeDtypeStruct(x.shape, x.dtype),
        grid_spec=pltpu.PrefetchScalarGridSpec(
            num_scalar_prefetch=0,
            grid=(BH, T // tt),
            in_specs=[pl.BlockSpec((tt, HS // 2), lambda b, i: (i, 0)),
                      pl.BlockSpec((tt, HS // 2), lambda b, i: (i, 0)),
                      pl.BlockSpec((1, tt, HS), lambda b, i: (b, i, 0))],
            out_specs=pl.BlockSpec((1, tt, HS), lambda b, i: (b, i, 0))),
        compiler_params=pltpu.CompilerParams(
            dimension_semantics=("parallel", "parallel"),
            vmem_limit_bytes=VMEM_LIMIT),
    )(cos, sin, x)


def flash_attention(q, k, v, *, t_q=TQ, t_kv=TKV):
    BH, T, HS = q.shape
    tq = _pick_tile(T, t_q, 8)
    tkv = _pick_tile(T, t_kv, 8)
    scale = 1.0 / math.sqrt(HS)
    kern = functools.partial(flash_attn_kernel, tq=tq, tkv=tkv, scale=scale)
    return pl.pallas_call(
        kern,
        out_shape=jax.ShapeDtypeStruct((BH, T, HS), q.dtype),
        grid_spec=pltpu.PrefetchScalarGridSpec(
            num_scalar_prefetch=0,
            grid=(BH, T // tq, T // tkv),
            in_specs=[pl.BlockSpec((1, tq, HS), lambda b, i, j: (b, i, 0)),
                      pl.BlockSpec((1, tkv, HS), lambda b, i, j: (b, j, 0)),
                      pl.BlockSpec((1, tkv, HS), lambda b, i, j: (b, j, 0))],
            out_specs=pl.BlockSpec((1, tq, HS), lambda b, i, j: (b, i, 0)),
            scratch_shapes=[pltpu.VMEM((1, tq, 1), jnp.float32),
                            pltpu.VMEM((1, tq, 1), jnp.float32),
                            pltpu.VMEM((1, tq, HS), jnp.float32)]),
        compiler_params=pltpu.CompilerParams(
            dimension_semantics=("parallel", "parallel", "arbitrary"),
            vmem_limit_bytes=VMEM_LIMIT),
    )(q, k, v)


# --------------------------------- glue ------------------------------------ #

def rope_tables(T, HS):
    """Half-width RoPE tables (T, HS/2), f32."""
    inv = 1.0 / (10000.0 ** (jnp.arange(0, HS, 2, dtype=jnp.float32) / HS))
    t = jnp.arange(T, dtype=jnp.float32)
    freqs = jnp.outer(t, inv)
    return jnp.cos(freqs), jnp.sin(freqs)


def split_heads(x, B, T, H, HS):    # (B*T, C) -> (B*H, T, HS)
    return x.reshape(B, T, H, HS).transpose(0, 2, 1, 3).reshape(B * H, T, HS)


def merge_heads(y, B, T, H, HS):    # (B*H, T, HS) -> (B*T, C)
    return y.reshape(B, H, T, HS).transpose(0, 2, 1, 3).reshape(B * T, H * HS)


def init_weights(key, cfg):
    V, C, L = cfg['vocab_size'], cfg['n_embd'], cfg['n_layer']
    hidden = 256 * ((int(2 / 3 * 4 * C) + 256 - 1) // 256)
    std = 0.02
    keys = iter(jax.random.split(key, 2 + 5 * L))

    def lin(shape):                 # nn.Linear-style init, stored (in, out) bf16
        return (std * jax.random.normal(next(keys), shape, jnp.float32)
                ).astype(jnp.bfloat16)

    w = {
        'emb':  lin((V, C)),
        'wout': lin((C, V)),
        'norm_g': jnp.ones((1, C), jnp.float32),
        'layers': [],
    }
    for _ in range(L):
        wqkv = lin((C, 3 * C))
        wo = lin((C, C))
        w1 = lin((C, hidden))
        w3 = lin((C, hidden))
        w2 = lin((hidden, C))
        w['layers'].append({
            'attn_g': jnp.ones((1, C), jnp.float32),
            'ffn_g':  jnp.ones((1, C), jnp.float32),
            'wqkv': wqkv,
            'wo':   wo,
            'w13':  jnp.concatenate([w1, w3], axis=1),
            'w2':   w2,
        })
    return w


def prepare_weights(weights, cfg):
    """One-time prep: permute the q/k columns of wqkv into per-head half
    layout ([even pair elems | odd pair elems]).  Applied identically to q and
    k, so q.k^T (and therefore the model output) is unchanged, but RoPE
    becomes a shuffle-free half rotation inside the kernels."""
    C, H = cfg['n_embd'], cfg['n_head']
    HS = C // H
    perm_head = jnp.concatenate([jnp.arange(0, HS, 2), jnp.arange(1, HS, 2)])
    perm = (jnp.arange(H)[:, None] * HS + perm_head[None, :]).reshape(-1)
    out = {'emb': weights['emb'], 'wout': weights['wout'],
           'norm_g': weights['norm_g'], 'layers': []}
    for lp in weights['layers']:
        wqkv = lp['wqkv']
        wq = wqkv[:, :C][:, perm]
        wk = wqkv[:, C:2 * C][:, perm]
        wv = wqkv[:, 2 * C:]
        nlp = dict(lp)
        nlp['wqkv'] = jnp.concatenate([wq, wk, wv], axis=1)
        out['layers'].append(nlp)
    return out


def llama_forward(toks, params, cfg):
    """Equivalent of Llama.forward(toks) with targets=None, attn_mask=None."""
    B, T = toks.shape
    C, H = cfg['n_embd'], cfg['n_head']
    HS = C // H
    x = params['emb'][toks].reshape(B * T, C)              # bf16 gather (glue)
    cos, sin = rope_tables(T, HS)

    for lp in params['layers']:
        # --- attention branch ---
        qkv = rmsnorm_matmul(x, lp['attn_g'], lp['wqkv'], jnp.bfloat16)
        q = split_heads(qkv[:, :C], B, T, H, HS)
        k = split_heads(qkv[:, C:2 * C], B, T, H, HS)
        v = split_heads(qkv[:, 2 * C:], B, T, H, HS)
        q = apply_rope_half(q, cos, sin)
        k = apply_rope_half(k, cos, sin)
        y = flash_attention(q, k, v)
        y = merge_heads(y, B, T, H, HS)
        x = matmul_residual(y, lp['wo'], x)                # x <- x + y @ wo
        # --- feed-forward branch (SwiGLU) ---
        h13 = rmsnorm_matmul(x, lp['ffn_g'], lp['w13'], jnp.bfloat16)
        x = swiglu_matmul_residual(h13, lp['w2'], x)       # x <- x + ffn(x)

    # final norm + vocab projection on the last position only
    x_last = x.reshape(B, T, C)[:, -1, :]
    pad = (-B) % 8                                         # sublane-align rows
    x_pad = jnp.pad(x_last, ((0, pad), (0, 0)))
    logits = rmsnorm_matmul(x_pad, params['norm_g'], params['wout'], jnp.float32)
    return logits[:B].reshape(B, 1, -1)                    # (B, 1, vocab)


# ---------------------------- pure-JAX reference ---------------------------- #
# Uses the RAW (un-permuted) weights and the original interleaved RoPE, so it
# also validates the half-layout weight-permutation trick.

def _rmsnorm_ref(x, g):
    xf = x.astype(jnp.float32)
    ms = jnp.mean(xf * xf, axis=-1, keepdims=True)
    return (xf * lax.rsqrt(ms + EPS) * g).astype(jnp.bfloat16)


def _rope_interleaved_ref(x, cos, sin):
    BH, T, HS = x.shape
    xf = x.astype(jnp.float32).reshape(BH, T, HS // 2, 2)
    xe, xo = xf[..., 0], xf[..., 1]
    oe = xe * cos[None] - xo * sin[None]
    oo = xo * cos[None] + xe * sin[None]
    return jnp.stack([oe, oo], axis=-1).reshape(BH, T, HS).astype(x.dtype)


def _ref_block(x, cos, sin, p, B, T, H):
    BT, C = x.shape
    HS = C // H
    xn = _rmsnorm_ref(x, p['attn_g'])
    qkv = jnp.dot(xn, p['wqkv'],
                  preferred_element_type=jnp.float32).astype(jnp.bfloat16)
    q = split_heads(qkv[:, :C], B, T, H, HS)
    k = split_heads(qkv[:, C:2 * C], B, T, H, HS)
    v = split_heads(qkv[:, 2 * C:], B, T, H, HS)
    q = _rope_interleaved_ref(q, cos, sin)
    k = _rope_interleaved_ref(k, cos, sin)
    s = jnp.einsum('bqd,bkd->bqk', q, k,
                   preferred_element_type=jnp.float32) / math.sqrt(HS)
    causal = jnp.tril(jnp.ones((T, T), dtype=bool))
    s = jnp.where(causal[None], s, NEG_INF)
    pa = jax.nn.softmax(s, axis=-1)
    y = jnp.einsum('bqk,bkd->bqd', pa.astype(jnp.bfloat16), v,
                   preferred_element_type=jnp.float32).astype(jnp.bfloat16)
    y = merge_heads(y, B, T, H, HS)
    x1 = (x.astype(jnp.float32)
          + jnp.dot(y, p['wo'], preferred_element_type=jnp.float32)
          ).astype(jnp.bfloat16)
    xn2 = _rmsnorm_ref(x1, p['ffn_g'])
    h13 = jnp.dot(xn2, p['w13'],
                  preferred_element_type=jnp.float32).astype(jnp.bfloat16)
    hidden = h13.shape[1] // 2
    h1 = h13[:, :hidden].astype(jnp.float32)
    h3 = h13[:, hidden:].astype(jnp.float32)
    a = (h1 * jax.nn.sigmoid(h1) * h3).astype(jnp.bfloat16)
    return (x1.astype(jnp.float32)
            + jnp.dot(a, p['w2'], preferred_element_type=jnp.float32)
            ).astype(jnp.bfloat16)


def ref_forward(toks, weights, cfg):
    B, T = toks.shape
    C, H = cfg['n_embd'], cfg['n_head']
    HS = C // H
    cos, sin = rope_tables(T, HS)
    x = weights['emb'][toks].reshape(B * T, C)
    for lp in weights['layers']:
        x = _ref_block(x, cos, sin, lp, B, T, H)
    x_last = x.reshape(B, T, C)[:, -1, :]
    xn = _rmsnorm_ref(x_last, weights['norm_g'])
    logits = jnp.dot(xn, weights['wout'], preferred_element_type=jnp.float32)
    return logits.reshape(B, 1, -1)


# ---------------------------------- main ------------------------------------ #

if __name__ == "__main__":
    cfg = dict(vocab_size=64, n_embd=32, n_head=4, n_layer=2,
               max_seq_len=16, pad_id=0)
    B, T = 2, 8

    key = jax.random.PRNGKey(0)
    kw, kt = jax.random.split(key)
    weights = init_weights(kw, cfg)
    toks = jax.random.randint(kt, (B, T), 0, cfg['vocab_size'], dtype=jnp.int32)

    kparams = prepare_weights(weights, cfg)     # one-time half-layout q/k prep
    fwd = jax.jit(lambda t, w: llama_forward(t, w, cfg))
    logits = jax.block_until_ready(fwd(toks, kparams))

    ref = ref_forward(toks, weights, cfg)

    assert logits.shape == (B, 1, cfg['vocab_size'])
    assert bool(jnp.all(jnp.isfinite(logits)))
    err = float(jnp.max(jnp.abs(logits - ref)))
    assert bool(jnp.allclose(logits, ref, atol=2e-2, rtol=2e-2)), err
    print("KERNEL_OK")
</pallas_src>

<mosaic_0001>
module attributes {stable_mosaic.version = 11 : i64} {
  func.func @rmsnorm_matmul_kernel(%arg0: i32, %arg1: i32, %arg2: memref<16x32xbf16, #tpu.memory_space<vmem>>, %arg3: memref<1x32xf32, #tpu.memory_space<vmem>>, %arg4: memref<32x96xbf16, #tpu.memory_space<vmem>>, %arg5: memref<16x96xbf16, #tpu.memory_space<vmem>>) attributes {dimension_semantics = [#tpu.dimension_semantics<parallel>, #tpu.dimension_semantics<parallel>], iteration_bounds = array<i64: 1, 1>, scalar_prefetch = 0 : i64, scratch_operands = 0 : i64, tpu.core_type = #tpu.core_type<tc>, window_params = [{transform_indices = @transform_0, window_bounds = array<i64: 16, 32>}, {pipeline_mode = #tpu.pipeline_mode<synchronous>, transform_indices = @transform_1, window_bounds = array<i64: 1, 32>}, {transform_indices = @transform_2, window_bounds = array<i64: 32, 96>}, {transform_indices = @transform_3, window_bounds = array<i64: 16, 96>}]} {
    %c0 = arith.constant 0 : index
    %c0_0 = arith.constant 0 : index
    %0 = vector.load %arg2[%c0, %c0_0] : memref<16x32xbf16, #tpu.memory_space<vmem>>, vector<16x32xbf16>
    %1 = arith.extf %0 : vector<16x32xbf16> to vector<16x32xf32>
    %2 = arith.mulf %1, %1 : vector<16x32xf32>
    %cst = arith.constant dense<0.000000e+00> : vector<16xf32>
    %3 = vector.multi_reduction <add>, %2, %cst [1] : vector<16x32xf32> to vector<16xf32>
    %4 = vector.shape_cast %3 : vector<16xf32> to vector<16x1xf32>
    %cst_1 = arith.constant 3.200000e+01 : f32
    %5 = vector.broadcast %cst_1 : f32 to vector<16x1xf32>
    %6 = arith.divf %4, %5 : vector<16x1xf32>
    %cst_2 = arith.constant 9.99999974E-6 : f32
    %7 = vector.broadcast %cst_2 : f32 to vector<16x1xf32>
    %8 = arith.addf %6, %7 : vector<16x1xf32>
    %9 = math.rsqrt %8 : vector<16x1xf32>
    %10 = vector.broadcast %9 : vector<16x1xf32> to vector<16x32xf32>
    %11 = arith.mulf %1, %10 : vector<16x32xf32>
    %c0_3 = arith.constant 0 : index
    %c0_4 = arith.constant 0 : index
    %12 = vector.load %arg3[%c0_3, %c0_4] : memref<1x32xf32, #tpu.memory_space<vmem>>, vector<1x32xf32>
    %13 = vector.broadcast %12 : vector<1x32xf32> to vector<16x32xf32>
    %14 = arith.mulf %11, %13 : vector<16x32xf32>
    %15 = arith.truncf %14 : vector<16x32xf32> to vector<16x32xbf16>
    %c0_5 = arith.constant 0 : index
    %c0_6 = arith.constant 0 : index
    %16 = vector.load %arg4[%c0_5, %c0_6] : memref<32x96xbf16, #tpu.memory_space<vmem>>, vector<32x96xbf16>
    %cst_7 = arith.constant dense<0.000000e+00> : vector<16x96xf32>
    %17 = tpu.matmul %15, %16, %cst_7 {dimension_numbers = #tpu.dot_dimension_numbers<[1], [0], [0], [1], [0, 0, 1, 1], [], []>} : vector<16x32xbf16>, vector<32x96xbf16>, vector<16x96xf32> -> vector<16x96xf32>
    %18 = arith.truncf %17 : vector<16x96xf32> to vector<16x96xbf16>
    %c0_8 = arith.constant 0 : index
    %c0_9 = arith.constant 0 : index
    %19 = vector.load %arg5[%c0_8, %c0_9] : memref<16x96xbf16, #tpu.memory_space<vmem>>, vector<16x96xbf16>
    tpu.vector_store %arg5[%c0_8, %c0_9], %18 {strides = array<i32>} : memref<16x96xbf16, #tpu.memory_space<vmem>>, vector<16x96xbf16>,
    return
  }
  func.func @transform_0(%arg0: i32, %arg1: i32) -> (i32, i32) {
    %c0_i32 = arith.constant 0 : i32
    %c0_i32_0 = arith.constant 0 : i32
    return %arg0, %c0_i32 : i32, i32
  }
  func.func @transform_1(%arg0: i32, %arg1: i32) -> (i32, i32) {
    %c0_i32 = arith.constant 0 : i32
    %c0_i32_0 = arith.constant 0 : i32
    %c0_i32_1 = arith.constant 0 : i32
    return %c0_i32, %c0_i32_0 : i32, i32
  }
  func.func @transform_2(%arg0: i32, %arg1: i32) -> (i32, i32) {
    %c0_i32 = arith.constant 0 : i32
    %c0_i32_0 = arith.constant 0 : i32
    return %c0_i32, %arg1 : i32, i32
  }
  func.func @transform_3(%arg0: i32, %arg1: i32) -> (i32, i32) {
    %c0_i32 = arith.constant 0 : i32
    return %arg0, %arg1 : i32, i32
  }
}

module attributes {stable_mosaic.version = 11 : i64} {
  func.func @rope_half_kernel(%arg0: i32, %arg1: i32, %arg2: memref<8x4xf32, #tpu.memory_space<vmem>>, %arg3: memref<8x4xf32, #tpu.memory_space<vmem>>, %arg4: memref<1x8x8xbf16, #tpu.memory_space<vmem>>, %arg5: memref<1x8x8xbf16, #tpu.memory_space<vmem>>) attributes {dimension_semantics = [#tpu.dimension_semantics<parallel>, #tpu.dimension_semantics<parallel>], iteration_bounds = array<i64: 8, 1>, scalar_prefetch = 0 : i64, scratch_operands = 0 : i64, tpu.core_type = #tpu.core_type<tc>, window_params = [{transform_indices = @transform_0, window_bounds = array<i64: 8, 4>}, {transform_indices = @transform_1, window_bounds = array<i64: 8, 4>}, {transform_indices = @transform_2, window_bounds = array<i64: 1, 8, 8>}, {transform_indices = @transform_3, window_bounds = array<i64: 1, 8, 8>}]} {
    %c0 = arith.constant 0 : index
    %c0_0 = arith.constant 0 : index
    %c0_1 = arith.constant 0 : index
    %0 = vector.load %arg4[%c0, %c0_0, %c0_1] : memref<1x8x8xbf16, #tpu.memory_space<vmem>>, vector<1x8x8xbf16>
    %1 = arith.extf %0 : vector<1x8x8xbf16> to vector<1x8x8xf32>
    %2 = vector.extract_strided_slice %1 {offsets = [0, 0, 0], sizes = [1, 8, 4], strides = [1, 1, 1]} : vector<1x8x8xf32> to vector<1x8x4xf32>
    %3 = vector.extract_strided_slice %1 {offsets = [0, 0, 4], sizes = [1, 8, 4], strides = [1, 1, 1]} : vector<1x8x8xf32> to vector<1x8x4xf32>
    %c0_2 = arith.constant 0 : index
    %c0_3 = arith.constant 0 : index
    %4 = vector.load %arg2[%c0_2, %c0_3] : memref<8x4xf32, #tpu.memory_space<vmem>>, vector<8x4xf32>
    %c0_4 = arith.constant 0 : index
    %c0_5 = arith.constant 0 : index
    %5 = vector.load %arg3[%c0_4, %c0_5] : memref<8x4xf32, #tpu.memory_space<vmem>>, vector<8x4xf32>
    %6 = vector.shape_cast %4 : vector<8x4xf32> to vector<1x8x4xf32>
    %7 = arith.mulf %2, %6 : vector<1x8x4xf32>
    %8 = vector.shape_cast %5 : vector<8x4xf32> to vector<1x8x4xf32>
    %9 = arith.mulf %3, %8 : vector<1x8x4xf32>
    %10 = arith.subf %7, %9 : vector<1x8x4xf32>
    %11 = arith.truncf %10 : vector<1x8x4xf32> to vector<1x8x4xbf16>
    %c0_6 = arith.constant 0 : index
    %c0_7 = arith.constant 0 : index
    %c0_8 = arith.constant 0 : index
    %12 = vector.load %arg5[%c0_6, %c0_7, %c0_8] : memref<1x8x8xbf16, #tpu.memory_space<vmem>>, vector<1x8x4xbf16>
    tpu.vector_store %arg5[%c0_6, %c0_7, %c0_8], %11 {strides = array<i32>} : memref<1x8x8xbf16, #tpu.memory_space<vmem>>, vector<1x8x4xbf16>,
    %13 = vector.shape_cast %4 : vector<8x4xf32> to vector<1x8x4xf32>
    %14 = arith.mulf %3, %13 : vector<1x8x4xf32>
    %15 = vector.shape_cast %5 : vector<8x4xf32> to vector<1x8x4xf32>
    %16 = arith.mulf %2, %15 : vector<1x8x4xf32>
    %17 = arith.addf %14, %16 : vector<1x8x4xf32>
    %18 = arith.truncf %17 : vector<1x8x4xf32> to vector<1x8x4xbf16>
    %c0_9 = arith.constant 0 : index
    %c0_10 = arith.constant 0 : index
    %c4 = arith.constant 4 : index
    %19 = vector.load %arg5[%c0_9, %c0_10, %c4] : memref<1x8x8xbf16, #tpu.memory_space<vmem>>, vector<1x8x4xbf16>
    tpu.vector_store %arg5[%c0_9, %c0_10, %c4], %18 {strides = array<i32>} : memref<1x8x8xbf16, #tpu.memory_space<vmem>>, vector<1x8x4xbf16>,
    return
  }
  func.func @transform_0(%arg0: i32, %arg1: i32) -> (i32, i32) {
    %c0_i32 = arith.constant 0 : i32
    %c0_i32_0 = arith.constant 0 : i32
    return %arg1, %c0_i32 : i32, i32
  }
  func.func @transform_1(%arg0: i32, %arg1: i32) -> (i32, i32) {
    %c0_i32 = arith.constant 0 : i32
    %c0_i32_0 = arith.constant 0 : i32
    return %arg1, %c0_i32 : i32, i32
  }
  func.func @transform_2(%arg0: i32, %arg1: i32) -> (i32, i32, i32) {
    %c0_i32 = arith.constant 0 : i32
    %c0_i32_0 = arith.constant 0 : i32
    return %arg0, %arg1, %c0_i32 : i32, i32, i32
  }
  func.func @transform_3(%arg0: i32, %arg1: i32) -> (i32, i32, i32) {
    %c0_i32 = arith.constant 0 : i32
    %c0_i32_0 = arith.constant 0 : i32
    return %arg0, %arg1, %c0_i32 : i32, i32, i32
  }
}

module attributes {stable_mosaic.version = 11 : i64} {
  func.func @flash_attn_kernel(%arg0: i32, %arg1: i32, %arg2: i32, %arg3: memref<1x8x8xbf16, #tpu.memory_space<vmem>>, %arg4: memref<1x8x8xbf16, #tpu.memory_space<vmem>>, %arg5: memref<1x8x8xbf16, #tpu.memory_space<vmem>>, %arg6: memref<1x8x8xbf16, #tpu.memory_space<vmem>>, %arg7: memref<1x8x1xf32, #tpu.memory_space<vmem>>, %arg8: memref<1x8x1xf32, #tpu.memory_space<vmem>>, %arg9: memref<1x8x8xf32, #tpu.memory_space<vmem>>) attributes {dimension_semantics = [#tpu.dimension_semantics<parallel>, #tpu.dimension_semantics<parallel>, #tpu.dimension_semantics<arbitrary>], iteration_bounds = array<i64: 8, 1, 1>, scalar_prefetch = 0 : i64, scratch_operands = 3 : i64, tpu.core_type = #tpu.core_type<tc>, window_params = [{transform_indices = @transform_0, window_bounds = array<i64: 1, 8, 8>}, {transform_indices = @transform_1, window_bounds = array<i64: 1, 8, 8>}, {transform_indices = @transform_2, window_bounds = array<i64: 1, 8, 8>}, {transform_indices = @transform_3, window_bounds = array<i64: 1, 8, 8>}]} {
    %c0_i32 = arith.constant 0 : i32
    %0 = arith.cmpi eq, %arg2, %c0_i32 : i32
    %1 = arith.extui %0 : i1 to i32
    %c0_i32_0 = arith.constant 0 : i32
    %2 = arith.cmpi ne, %1, %c0_i32_0 : i32
    scf.if %2 {
      %cst = arith.constant 0xFF800000 : f32
      %12 = vector.broadcast %cst : f32 to vector<1x8x1xf32>
      %c0 = arith.constant 0 : index
      %c0_5 = arith.constant 0 : index
      %c0_6 = arith.constant 0 : index
      %13 = vector.load %arg7[%c0, %c0_5, %c0_6] : memref<1x8x1xf32, #tpu.memory_space<vmem>>, vector<1x8x1xf32>
      tpu.vector_store %arg7[%c0, %c0_5, %c0_6], %12 {strides = array<i32>} : memref<1x8x1xf32, #tpu.memory_space<vmem>>, vector<1x8x1xf32>,
      %cst_7 = arith.constant 0.000000e+00 : f32
      %14 = vector.broadcast %cst_7 : f32 to vector<1x8x1xf32>
      %c0_8 = arith.constant 0 : index
      %c0_9 = arith.constant 0 : index
      %c0_10 = arith.constant 0 : index
      %15 = vector.load %arg8[%c0_8, %c0_9, %c0_10] : memref<1x8x1xf32, #tpu.memory_space<vmem>>, vector<1x8x1xf32>
      tpu.vector_store %arg8[%c0_8, %c0_9, %c0_10], %14 {strides = array<i32>} : memref<1x8x1xf32, #tpu.memory_space<vmem>>, vector<1x8x1xf32>,
      %cst_11 = arith.constant 0.000000e+00 : f32
      %16 = vector.broadcast %cst_11 : f32 to vector<1x8x8xf32>
      %c0_12 = arith.constant 0 : index
      %c0_13 = arith.constant 0 : index
      %c0_14 = arith.constant 0 : index
      %17 = vector.load %arg9[%c0_12, %c0_13, %c0_14] : memref<1x8x8xf32, #tpu.memory_space<vmem>>, vector<1x8x8xf32>
      tpu.vector_store %arg9[%c0_12, %c0_13, %c0_14], %16 {strides = array<i32>} : memref<1x8x8xf32, #tpu.memory_space<vmem>>, vector<1x8x8xf32>,
    } else {
    }
    %c8_i32 = arith.constant 8 : i32
    %3 = arith.muli %arg2, %c8_i32 : i32
    %c1_i32 = arith.constant 1 : i32
    %4 = arith.addi %arg1, %c1_i32 : i32
    %c8_i32_1 = arith.constant 8 : i32
    %5 = arith.muli %4, %c8_i32_1 : i32
    %6 = arith.cmpi slt, %3, %5 : i32
    %7 = arith.extui %6 : i1 to i32
    %c0_i32_2 = arith.constant 0 : i32
    %8 = arith.cmpi ne, %7, %c0_i32_2 : i32
    scf.if %8 {
      %c0 = arith.constant 0 : index
      %c0_5 = arith.constant 0 : index
      %c0_6 = arith.constant 0 : index
      %12 = vector.load %arg3[%c0, %c0_5, %c0_6] : memref<1x8x8xbf16, #tpu.memory_space<vmem>>, vector<1x8x8xbf16>
      %c0_7 = arith.constant 0 : index
      %c0_8 = arith.constant 0 : index
      %c0_9 = arith.constant 0 : index
      %13 = vector.load %arg4[%c0_7, %c0_8, %c0_9] : memref<1x8x8xbf16, #tpu.memory_space<vmem>>, vector<1x8x8xbf16>
      "tpu.trace_start"() <{level = 10 : i32, message = "bqd,bkd->bqk"}> : () -> ()
      %cst = arith.constant dense<0.000000e+00> : vector<1x8x8xf32>
      %14 = tpu.matmul %12, %13, %cst {dimension_numbers = #tpu.dot_dimension_numbers<[2], [2], [1], [1], [0, 0, 0, 1, 1, 1], [0], [0]>} : vector<1x8x8xbf16>, vector<1x8x8xbf16>, vector<1x8x8xf32> -> vector<1x8x8xf32>
      "tpu.trace_stop"() : () -> ()
      %cst_10 = arith.constant 0.353553385 : f32
      %15 = vector.broadcast %cst_10 : f32 to vector<1x8x8xf32>
      %16 = arith.mulf %14, %15 : vector<1x8x8xf32>
      %17 = tpu.iota {dimensions = array<i32: 1>} : vector<1x8x8xi32>
      %c8_i32_11 = arith.constant 8 : i32
      %18 = arith.muli %arg1, %c8_i32_11 : i32
      %19 = vector.broadcast %18 : i32 to vector<1x8x8xi32>
      %20 = arith.addi %17, %19 : vector<1x8x8xi32>
      %21 = tpu.iota {dimensions = array<i32: 2>} : vector<1x8x8xi32>
      %c8_i32_12 = arith.constant 8 : i32
      %22 = arith.muli %arg2, %c8_i32_12 : i32
      %23 = vector.broadcast %22 : i32 to vector<1x8x8xi32>
      %24 = arith.addi %21, %23 : vector<1x8x8xi32>
      %25 = arith.cmpi sge, %20, %24 : vector<1x8x8xi32>
      %cst_13 = arith.constant -1.000000e+30 : f32
      %26 = vector.broadcast %cst_13 : f32 to vector<1x8x8xf32>
      %27 = arith.select %25, %16, %26 : vector<1x8x8xi1>, vector<1x8x8xf32>
      %c0_14 = arith.constant 0 : index
      %c0_15 = arith.constant 0 : index
      %c0_16 = arith.constant 0 : index
      %28 = vector.load %arg7[%c0_14, %c0_15, %c0_16] : memref<1x8x1xf32, #tpu.memory_space<vmem>>, vector<1x8x1xf32>
      %cst_17 = arith.constant dense<0xFF800000> : vector<1x8xf32>
      %29 = vector.multi_reduction <maximumf>, %27, %cst_17 [2] : vector<1x8x8xf32> to vector<1x8xf32>
      %30 = vector.shape_cast %29 : vector<1x8xf32> to vector<1x8x1xf32>
      %31 = arith.maximumf %28, %30 : vector<1x8x1xf32>
      %32 = arith.subf %28, %31 : vector<1x8x1xf32>
      %33 = math.exp %32 : vector<1x8x1xf32>
      %34 = vector.broadcast %31 : vector<1x8x1xf32> to vector<1x8x8xf32>
      %35 = arith.subf %27, %34 : vector<1x8x8xf32>
      %36 = math.exp %35 : vector<1x8x8xf32>
      %c0_18 = arith.constant 0 : index
      %c0_19 = arith.constant 0 : index
      %c0_20 = arith.constant 0 : index
      %37 = vector.load %arg8[%c0_18, %c0_19, %c0_20] : memref<1x8x1xf32, #tpu.memory_space<vmem>>, vector<1x8x1xf32>
      %38 = arith.mulf %33, %37 : vector<1x8x1xf32>
      %cst_21 = arith.constant dense<0.000000e+00> : vector<1x8xf32>
      %39 = vector.multi_reduction <add>, %36, %cst_21 [2] : vector<1x8x8xf32> to vector<1x8xf32>
      %40 = vector.shape_cast %39 : vector<1x8xf32> to vector<1x8x1xf32>
      %41 = arith.addf %38, %40 : vector<1x8x1xf32>
      %c0_22 = arith.constant 0 : index
      %c0_23 = arith.constant 0 : index
      %c0_24 = arith.constant 0 : index
      %42 = vector.load %arg8[%c0_22, %c0_23, %c0_24] : memref<1x8x1xf32, #tpu.memory_space<vmem>>, vector<1x8x1xf32>
      tpu.vector_store %arg8[%c0_22, %c0_23, %c0_24], %41 {strides = array<i32>} : memref<1x8x1xf32, #tpu.memory_space<vmem>>, vector<1x8x1xf32>,
      %c0_25 = arith.constant 0 : index
      %c0_26 = arith.constant 0 : index
      %c0_27 = arith.constant 0 : index
      %43 = vector.load %arg9[%c0_25, %c0_26, %c0_27] : memref<1x8x8xf32, #tpu.memory_space<vmem>>, vector<1x8x8xf32>
      %44 = vector.broadcast %33 : vector<1x8x1xf32> to vector<1x8x8xf32>
      %45 = arith.mulf %44, %43 : vector<1x8x8xf32>
      %46 = arith.truncf %36 : vector<1x8x8xf32> to vector<1x8x8xbf16>
      %c0_28 = arith.constant 0 : index
      %c0_29 = arith.constant 0 : index
      %c0_30 = arith.constant 0 : index
      %47 = vector.load %arg5[%c0_28, %c0_29, %c0_30] : memref<1x8x8xbf16, #tpu.memory_space<vmem>>, vector<1x8x8xbf16>
      "tpu.trace_start"() <{level = 10 : i32, message = "bqk,bkd->bqd"}> : () -> ()
      %cst_31 = arith.constant dense<0.000000e+00> : vector<1x8x8xf32>
      %48 = tpu.matmul %46, %47, %cst_31 {dimension_numbers = #tpu.dot_dimension_numbers<[2], [1], [1], [2], [0, 0, 0, 1, 1, 2], [0], [0]>} : vector<1x8x8xbf16>, vector<1x8x8xbf16>, vector<1x8x8xf32> -> vector<1x8x8xf32>
      "tpu.trace_stop"() : () -> ()
      %49 = arith.addf %45, %48 : vector<1x8x8xf32>
      %c0_32 = arith.constant 0 : index
      %c0_33 = arith.constant 0 : index
      %c0_34 = arith.constant 0 : index
      %50 = vector.load %arg9[%c0_32, %c0_33, %c0_34] : memref<1x8x8xf32, #tpu.memory_space<vmem>>, vector<1x8x8xf32>
      tpu.vector_store %arg9[%c0_32, %c0_33, %c0_34], %49 {strides = array<i32>} : memref<1x8x8xf32, #tpu.memory_space<vmem>>, vector<1x8x8xf32>,
      %c0_35 = arith.constant 0 : index
      %c0_36 = arith.constant 0 : index
      %c0_37 = arith.constant 0 : index
      %51 = vector.load %arg7[%c0_35, %c0_36, %c0_37] : memref<1x8x1xf32, #tpu.memory_space<vmem>>, vector<1x8x1xf32>
      tpu.vector_store %arg7[%c0_35, %c0_36, %c0_37], %31 {strides = array<i32>} : memref<1x8x1xf32, #tpu.memory_space<vmem>>, vector<1x8x1xf32>,
    } else {
    }
    %c0_i32_3 = arith.constant 0 : i32
    %9 = arith.cmpi eq, %arg2, %c0_i32_3 : i32
    %10 = arith.extui %9 : i1 to i32
    %c0_i32_4 = arith.constant 0 : i32
    %11 = arith.cmpi ne, %10, %c0_i32_4 : i32
    scf.if %11 {
      %c0 = arith.constant 0 : index
      %c0_5 = arith.constant 0 : index
      %c0_6 = arith.constant 0 : index
      %12 = vector.load %arg8[%c0, %c0_5, %c0_6] : memref<1x8x1xf32, #tpu.memory_space<vmem>>, vector<1x8x1xf32>
      %13 = tpu.reciprocal %12 {approx = true} : vector<1x8x1xf32> -> vector<1x8x1xf32>
      %c0_7 = arith.constant 0 : index
      %c0_8 = arith.constant 0 : index
      %c0_9 = arith.constant 0 : index
      %14 = vector.load %arg9[%c0_7, %c0_8, %c0_9] : memref<1x8x8xf32, #tpu.memory_space<vmem>>, vector<1x8x8xf32>
      %15 = vector.broadcast %13 : vector<1x8x1xf32> to vector<1x8x8xf32>
      %16 = arith.mulf %14, %15 : vector<1x8x8xf32>
      %17 = arith.truncf %16 : vector<1x8x8xf32> to vector<1x8x8xbf16>
      %c0_10 = arith.constant 0 : index
      %c0_11 = arith.constant 0 : index
      %c0_12 = arith.constant 0 : index
      %18 = vector.load %arg6[%c0_10, %c0_11, %c0_12] : memref<1x8x8xbf16, #tpu.memory_space<vmem>>, vector<1x8x8xbf16>
      tpu.vector_store %arg6[%c0_10, %c0_11, %c0_12], %17 {strides = array<i32>} : memref<1x8x8xbf16, #tpu.memory_space<vmem>>, vector<1x8x8xbf16>,
    } else {
    }
    return
  }
  func.func @transform_0(%arg0: i32, %arg1: i32, %arg2: i32) -> (i32, i32, i32) {
    %c0_i32 = arith.constant 0 : i32
    %c0_i32_0 = arith.constant 0 : i32
    return %arg0, %arg1, %c0_i32 : i32, i32, i32
  }
  func.func @transform_1(%arg0: i32, %arg1: i32, %arg2: i32) -> (i32, i32, i32) {
    %c0_i32 = arith.constant 0 : i32
    %c0_i32_0 = arith.constant 0 : i32
    return %arg0, %arg2, %c0_i32 : i32, i32, i32
  }
  func.func @transform_2(%arg0: i32, %arg1: i32, %arg2: i32) -> (i32, i32, i32) {
    %c0_i32 = arith.constant 0 : i32
    %c0_i32_0 = arith.constant 0 : i32
    return %arg0, %arg2, %c0_i32 : i32, i32, i32
  }
  func.func @transform_3(%arg0: i32, %arg1: i32, %arg2: i32) -> (i32, i32, i32) {
    %c0_i32 = arith.constant 0 : i32
    %c0_i32_0 = arith.constant 0 : i32
    return %arg0, %arg1, %c0_i32 : i32, i32, i32
  }
}

module attributes {stable_mosaic.version = 11 : i64} {
  func.func @matmul_residual_kernel(%arg0: i32, %arg1: i32, %arg2: i32, %arg3: memref<16x32xbf16, #tpu.memory_space<vmem>>, %arg4: memref<32x32xbf16, #tpu.memory_space<vmem>>, %arg5: memref<16x32xbf16, #tpu.memory_space<vmem>>, %arg6: memref<16x32xbf16, #tpu.memory_space<vmem>>, %arg7: memref<16x32xf32, #tpu.memory_space<vmem>>) attributes {dimension_semantics = [#tpu.dimension_semantics<parallel>, #tpu.dimension_semantics<parallel>, #tpu.dimension_semantics<arbitrary>], iteration_bounds = array<i64: 1, 1, 1>, scalar_prefetch = 0 : i64, scratch_operands = 1 : i64, tpu.core_type = #tpu.core_type<tc>, window_params = [{transform_indices = @transform_0, window_bounds = array<i64: 16, 32>}, {transform_indices = @transform_1, window_bounds = array<i64: 32, 32>}, {transform_indices = @transform_2, window_bounds = array<i64: 16, 32>}, {transform_indices = @transform_3, window_bounds = array<i64: 16, 32>}]} {
    %c0_i32 = arith.constant 0 : i32
    %0 = arith.cmpi eq, %arg2, %c0_i32 : i32
    %1 = arith.extui %0 : i1 to i32
    %c0_i32_0 = arith.constant 0 : i32
    %2 = arith.cmpi ne, %1, %c0_i32_0 : i32
    scf.if %2 {
      %cst_10 = arith.constant 0.000000e+00 : f32
      %12 = vector.broadcast %cst_10 : f32 to vector<16x32xf32>
      %c0_11 = arith.constant 0 : index
      %c0_12 = arith.constant 0 : index
      %13 = vector.load %arg7[%c0_11, %c0_12] : memref<16x32xf32, #tpu.memory_space<vmem>>, vector<16x32xf32>
      tpu.vector_store %arg7[%c0_11, %c0_12], %12 {strides = array<i32>} : memref<16x32xf32, #tpu.memory_space<vmem>>, vector<16x32xf32>,
    } else {
    }
    %c0 = arith.constant 0 : index
    %c0_1 = arith.constant 0 : index
    %3 = vector.load %arg7[%c0, %c0_1] : memref<16x32xf32, #tpu.memory_space<vmem>>, vector<16x32xf32>
    %c0_2 = arith.constant 0 : index
    %c0_3 = arith.constant 0 : index
    %4 = vector.load %arg3[%c0_2, %c0_3] : memref<16x32xbf16, #tpu.memory_space<vmem>>, vector<16x32xbf16>
    %c0_4 = arith.constant 0 : index
    %c0_5 = arith.constant 0 : index
    %5 = vector.load %arg4[%c0_4, %c0_5] : memref<32x32xbf16, #tpu.memory_space<vmem>>, vector<32x32xbf16>
    %cst = arith.constant dense<0.000000e+00> : vector<16x32xf32>
    %6 = tpu.matmul %4, %5, %cst {dimension_numbers = #tpu.dot_dimension_numbers<[1], [0], [0], [1], [0, 0, 1, 1], [], []>} : vector<16x32xbf16>, vector<32x32xbf16>, vector<16x32xf32> -> vector<16x32xf32>
    %7 = arith.addf %3, %6 : vector<16x32xf32>
    %c0_6 = arith.constant 0 : index
    %c0_7 = arith.constant 0 : index
    %8 = vector.load %arg7[%c0_6, %c0_7] : memref<16x32xf32, #tpu.memory_space<vmem>>, vector<16x32xf32>
    tpu.vector_store %arg7[%c0_6, %c0_7], %7 {strides = array<i32>} : memref<16x32xf32, #tpu.memory_space<vmem>>, vector<16x32xf32>,
    %c0_i32_8 = arith.constant 0 : i32
    %9 = arith.cmpi eq, %arg2, %c0_i32_8 : i32
    %10 = arith.extui %9 : i1 to i32
    %c0_i32_9 = arith.constant 0 : i32
    %11 = arith.cmpi ne, %10, %c0_i32_9 : i32
    scf.if %11 {
      %c0_10 = arith.constant 0 : index
      %c0_11 = arith.constant 0 : index
      %12 = vector.load %arg5[%c0_10, %c0_11] : memref<16x32xbf16, #tpu.memory_space<vmem>>, vector<16x32xbf16>
      %13 = arith.extf %12 : vector<16x32xbf16> to vector<16x32xf32>
      %c0_12 = arith.constant 0 : index
      %c0_13 = arith.constant 0 : index
      %14 = vector.load %arg7[%c0_12, %c0_13] : memref<16x32xf32, #tpu.memory_space<vmem>>, vector<16x32xf32>
      %15 = arith.addf %13, %14 : vector<16x32xf32>
      %16 = arith.truncf %15 : vector<16x32xf32> to vector<16x32xbf16>
      %c0_14 = arith.constant 0 : index
      %c0_15 = arith.constant 0 : index
      %17 = vector.load %arg6[%c0_14, %c0_15] : memref<16x32xbf16, #tpu.memory_space<vmem>>, vector<16x32xbf16>
      tpu.vector_store %arg6[%c0_14, %c0_15], %16 {strides = array<i32>} : memref<16x32xbf16, #tpu.memory_space<vmem>>, vector<16x32xbf16>,
    } else {
    }
    return
  }
  func.func @transform_0(%arg0: i32, %arg1: i32, %arg2: i32) -> (i32, i32) {
    %c0_i32 = arith.constant 0 : i32
    return %arg0, %arg2 : i32, i32
  }
  func.func @transform_1(%arg0: i32, %arg1: i32, %arg2: i32) -> (i32, i32) {
    %c0_i32 = arith.constant 0 : i32
    return %arg2, %arg1 : i32, i32
  }
  func.func @transform_2(%arg0: i32, %arg1: i32, %arg2: i32) -> (i32, i32) {
    %c0_i32 = arith.constant 0 : i32
    return %arg0, %arg1 : i32, i32
  }
  func.func @transform_3(%arg0: i32, %arg1: i32, %arg2: i32) -> (i32, i32) {
    %c0_i32 = arith.constant 0 : i32
    return %arg0, %arg1 : i32, i32
  }
}

module attributes {stable_mosaic.version = 11 : i64} {
  func.func @rmsnorm_matmul_kernel(%arg0: i32, %arg1: i32, %arg2: memref<16x32xbf16, #tpu.memory_space<vmem>>, %arg3: memref<1x32xf32, #tpu.memory_space<vmem>>, %arg4: memref<32x512xbf16, #tpu.memory_space<vmem>>, %arg5: memref<16x512xbf16, #tpu.memory_space<vmem>>) attributes {dimension_semantics = [#tpu.dimension_semantics<parallel>, #tpu.dimension_semantics<parallel>], iteration_bounds = array<i64: 1, 1>, scalar_prefetch = 0 : i64, scratch_operands = 0 : i64, tpu.core_type = #tpu.core_type<tc>, window_params = [{transform_indices = @transform_0, window_bounds = array<i64: 16, 32>}, {pipeline_mode = #tpu.pipeline_mode<synchronous>, transform_indices = @transform_1, window_bounds = array<i64: 1, 32>}, {transform_indices = @transform_2, window_bounds = array<i64: 32, 512>}, {transform_indices = @transform_3, window_bounds = array<i64: 16, 512>}]} {
    %c0 = arith.constant 0 : index
    %c0_0 = arith.constant 0 : index
    %0 = vector.load %arg2[%c0, %c0_0] : memref<16x32xbf16, #tpu.memory_space<vmem>>, vector<16x32xbf16>
    %1 = arith.extf %0 : vector<16x32xbf16> to vector<16x32xf32>
    %2 = arith.mulf %1, %1 : vector<16x32xf32>
    %cst = arith.constant dense<0.000000e+00> : vector<16xf32>
    %3 = vector.multi_reduction <add>, %2, %cst [1] : vector<16x32xf32> to vector<16xf32>
    %4 = vector.shape_cast %3 : vector<16xf32> to vector<16x1xf32>
    %cst_1 = arith.constant 3.200000e+01 : f32
    %5 = vector.broadcast %cst_1 : f32 to vector<16x1xf32>
    %6 = arith.divf %4, %5 : vector<16x1xf32>
    %cst_2 = arith.constant 9.99999974E-6 : f32
    %7 = vector.broadcast %cst_2 : f32 to vector<16x1xf32>
    %8 = arith.addf %6, %7 : vector<16x1xf32>
    %9 = math.rsqrt %8 : vector<16x1xf32>
    %10 = vector.broadcast %9 : vector<16x1xf32> to vector<16x32xf32>
    %11 = arith.mulf %1, %10 : vector<16x32xf32>
    %c0_3 = arith.constant 0 : index
    %c0_4 = arith.constant 0 : index
    %12 = vector.load %arg3[%c0_3, %c0_4] : memref<1x32xf32, #tpu.memory_space<vmem>>, vector<1x32xf32>
    %13 = vector.broadcast %12 : vector<1x32xf32> to vector<16x32xf32>
    %14 = arith.mulf %11, %13 : vector<16x32xf32>
    %15 = arith.truncf %14 : vector<16x32xf32> to vector<16x32xbf16>
    %c0_5 = arith.constant 0 : index
    %c0_6 = arith.constant 0 : index
    %16 = vector.load %arg4[%c0_5, %c0_6] : memref<32x512xbf16, #tpu.memory_space<vmem>>, vector<32x512xbf16>
    %cst_7 = arith.constant dense<0.000000e+00> : vector<16x512xf32>
    %17 = tpu.matmul %15, %16, %cst_7 {dimension_numbers = #tpu.dot_dimension_numbers<[1], [0], [0], [1], [0, 0, 1, 1], [], []>} : vector<16x32xbf16>, vector<32x512xbf16>, vector<16x512xf32> -> vector<16x512xf32>
    %18 = arith.truncf %17 : vector<16x512xf32> to vector<16x512xbf16>
    %c0_8 = arith.constant 0 : index
    %c0_9 = arith.constant 0 : index
    %19 = vector.load %arg5[%c0_8, %c0_9] : memref<16x512xbf16, #tpu.memory_space<vmem>>, vector<16x512xbf16>
    tpu.vector_store %arg5[%c0_8, %c0_9], %18 {strides = array<i32>} : memref<16x512xbf16, #tpu.memory_space<vmem>>, vector<16x512xbf16>,
    return
  }
  func.func @transform_0(%arg0: i32, %arg1: i32) -> (i32, i32) {
    %c0_i32 = arith.constant 0 : i32
    %c0_i32_0 = arith.constant 0 : i32
    return %arg0, %c0_i32 : i32, i32
  }
  func.func @transform_1(%arg0: i32, %arg1: i32) -> (i32, i32) {
    %c0_i32 = arith.constant 0 : i32
    %c0_i32_0 = arith.constant 0 : i32
    %c0_i32_1 = arith.constant 0 : i32
    return %c0_i32, %c0_i32_0 : i32, i32
  }
  func.func @transform_2(%arg0: i32, %arg1: i32) -> (i32, i32) {
    %c0_i32 = arith.constant 0 : i32
    %c0_i32_0 = arith.constant 0 : i32
    return %c0_i32, %arg1 : i32, i32
  }
  func.func @transform_3(%arg0: i32, %arg1: i32) -> (i32, i32) {
    %c0_i32 = arith.constant 0 : i32
    return %arg0, %arg1 : i32, i32
  }
}

module attributes {stable_mosaic.version = 11 : i64} {
  func.func @swiglu_matmul_residual_kernel(%arg0: i32, %arg1: i32, %arg2: i32, %arg3: memref<16x256xbf16, #tpu.memory_space<vmem>>, %arg4: memref<16x256xbf16, #tpu.memory_space<vmem>>, %arg5: memref<256x32xbf16, #tpu.memory_space<vmem>>, %arg6: memref<16x32xbf16, #tpu.memory_space<vmem>>, %arg7: memref<16x32xbf16, #tpu.memory_space<vmem>>, %arg8: memref<16x32xf32, #tpu.memory_space<vmem>>) attributes {dimension_semantics = [#tpu.dimension_semantics<parallel>, #tpu.dimension_semantics<parallel>, #tpu.dimension_semantics<arbitrary>], iteration_bounds = array<i64: 1, 1, 1>, scalar_prefetch = 0 : i64, scratch_operands = 1 : i64, tpu.core_type = #tpu.core_type<tc>, window_params = [{transform_indices = @transform_0, window_bounds = array<i64: 16, 256>}, {transform_indices = @transform_1, window_bounds = array<i64: 16, 256>}, {transform_indices = @transform_2, window_bounds = array<i64: 256, 32>}, {transform_indices = @transform_3, window_bounds = array<i64: 16, 32>}, {transform_indices = @transform_4, window_bounds = array<i64: 16, 32>}]} {
    %c0_i32 = arith.constant 0 : i32
    %0 = arith.cmpi eq, %arg2, %c0_i32 : i32
    %1 = arith.extui %0 : i1 to i32
    %c0_i32_0 = arith.constant 0 : i32
    %2 = arith.cmpi ne, %1, %c0_i32_0 : i32
    scf.if %2 {
      %cst_13 = arith.constant 0.000000e+00 : f32
      %23 = vector.broadcast %cst_13 : f32 to vector<16x32xf32>
      %c0_14 = arith.constant 0 : index
      %c0_15 = arith.constant 0 : index
      %24 = vector.load %arg8[%c0_14, %c0_15] : memref<16x32xf32, #tpu.memory_space<vmem>>, vector<16x32xf32>
      tpu.vector_store %arg8[%c0_14, %c0_15], %23 {strides = array<i32>} : memref<16x32xf32, #tpu.memory_space<vmem>>, vector<16x32xf32>,
    } else {
    }
    %c0 = arith.constant 0 : index
    %c0_1 = arith.constant 0 : index
    %3 = vector.load %arg3[%c0, %c0_1] : memref<16x256xbf16, #tpu.memory_space<vmem>>, vector<16x256xbf16>
    %4 = arith.extf %3 : vector<16x256xbf16> to vector<16x256xf32>
    %c0_2 = arith.constant 0 : index
    %c0_3 = arith.constant 0 : index
    %5 = vector.load %arg4[%c0_2, %c0_3] : memref<16x256xbf16, #tpu.memory_space<vmem>>, vector<16x256xbf16>
    %6 = arith.extf %5 : vector<16x256xbf16> to vector<16x256xf32>
    %7 = arith.negf %4 : vector<16x256xf32>
    %8 = math.exp %7 : vector<16x256xf32>
    %cst = arith.constant 1.000000e+00 : f32
    %9 = vector.broadcast %cst : f32 to vector<16x256xf32>
    %10 = arith.addf %9, %8 : vector<16x256xf32>
    %11 = arith.divf %9, %10 : vector<16x256xf32>
    %12 = arith.mulf %4, %11 : vector<16x256xf32>
    %13 = arith.mulf %12, %6 : vector<16x256xf32>
    %14 = arith.truncf %13 : vector<16x256xf32> to vector<16x256xbf16>
    %c0_4 = arith.constant 0 : index
    %c0_5 = arith.constant 0 : index
    %15 = vector.load %arg8[%c0_4, %c0_5] : memref<16x32xf32, #tpu.memory_space<vmem>>, vector<16x32xf32>
    %c0_6 = arith.constant 0 : index
    %c0_7 = arith.constant 0 : index
    %16 = vector.load %arg5[%c0_6, %c0_7] : memref<256x32xbf16, #tpu.memory_space<vmem>>, vector<256x32xbf16>
    %cst_8 = arith.constant dense<0.000000e+00> : vector<16x32xf32>
    %17 = tpu.matmul %14, %16, %cst_8 {dimension_numbers = #tpu.dot_dimension_numbers<[1], [0], [0], [1], [0, 0, 1, 1], [], []>} : vector<16x256xbf16>, vector<256x32xbf16>, vector<16x32xf32> -> vector<16x32xf32>
    %18 = arith.addf %15, %17 : vector<16x32xf32>
    %c0_9 = arith.constant 0 : index
    %c0_10 = arith.constant 0 : index
    %19 = vector.load %arg8[%c0_9, %c0_10] : memref<16x32xf32, #tpu.memory_space<vmem>>, vector<16x32xf32>
    tpu.vector_store %arg8[%c0_9, %c0_10], %18 {strides = array<i32>} : memref<16x32xf32, #tpu.memory_space<vmem>>, vector<16x32xf32>,
    %c0_i32_11 = arith.constant 0 : i32
    %20 = arith.cmpi eq, %arg2, %c0_i32_11 : i32
    %21 = arith.extui %20 : i1 to i32
    %c0_i32_12 = arith.constant 0 : i32
    %22 = arith.cmpi ne, %21, %c0_i32_12 : i32
    scf.if %22 {
      %c0_13 = arith.constant 0 : index
      %c0_14 = arith.constant 0 : index
      %23 = vector.load %arg6[%c0_13, %c0_14] : memref<16x32xbf16, #tpu.memory_space<vmem>>, vector<16x32xbf16>
      %24 = arith.extf %23 : vector<16x32xbf16> to vector<16x32xf32>
      %c0_15 = arith.constant 0 : index
      %c0_16 = arith.constant 0 : index
      %25 = vector.load %arg8[%c0_15, %c0_16] : memref<16x32xf32, #tpu.memory_space<vmem>>, vector<16x32xf32>
      %26 = arith.addf %24, %25 : vector<16x32xf32>
      %27 = arith.truncf %26 : vector<16x32xf32> to vector<16x32xbf16>
      %c0_17 = arith.constant 0 : index
      %c0_18 = arith.constant 0 : index
      %28 = vector.load %arg7[%c0_17, %c0_18] : memref<16x32xbf16, #tpu.memory_space<vmem>>, vector<16x32xbf16>
      tpu.vector_store %arg7[%c0_17, %c0_18], %27 {strides = array<i32>} : memref<16x32xbf16, #tpu.memory_space<vmem>>, vector<16x32xbf16>,
    } else {
    }
    return
  }
  func.func @transform_0(%arg0: i32, %arg1: i32, %arg2: i32) -> (i32, i32) {
    %c0_i32 = arith.constant 0 : i32
    return %arg0, %arg2 : i32, i32
  }
  func.func @transform_1(%arg0: i32, %arg1: i32, %arg2: i32) -> (i32, i32) {
    %c1_i32 = arith.constant 1 : i32
    %0 = arith.addi %arg2, %c1_i32 : i32
    %c0_i32 = arith.constant 0 : i32
    return %arg0, %0 : i32, i32
  }
  func.func @transform_2(%arg0: i32, %arg1: i32, %arg2: i32) -> (i32, i32) {
    %c0_i32 = arith.constant 0 : i32
    return %arg2, %arg1 : i32, i32
  }
  func.func @transform_3(%arg0: i32, %arg1: i32, %arg2: i32) -> (i32, i32) {
    %c0_i32 = arith.constant 0 : i32
    return %arg0, %arg1 : i32, i32
  }
  func.func @transform_4(%arg0: i32, %arg1: i32, %arg2: i32) -> (i32, i32) {
    %c0_i32 = arith.constant 0 : i32
    return %arg0, %arg1 : i32, i32
  }
}

module attributes {stable_mosaic.version = 11 : i64} {
  func.func @rmsnorm_matmul_kernel(%arg0: i32, %arg1: i32, %arg2: memref<8x32xbf16, #tpu.memory_space<vmem>>, %arg3: memref<1x32xf32, #tpu.memory_space<vmem>>, %arg4: memref<32x64xbf16, #tpu.memory_space<vmem>>, %arg5: memref<8x64xf32, #tpu.memory_space<vmem>>) attributes {dimension_semantics = [#tpu.dimension_semantics<parallel>, #tpu.dimension_semantics<parallel>], iteration_bounds = array<i64: 1, 1>, scalar_prefetch = 0 : i64, scratch_operands = 0 : i64, tpu.core_type = #tpu.core_type<tc>, window_params = [{transform_indices = @transform_0, window_bounds = array<i64: 8, 32>}, {pipeline_mode = #tpu.pipeline_mode<synchronous>, transform_indices = @transform_1, window_bounds = array<i64: 1, 32>}, {transform_indices = @transform_2, window_bounds = array<i64: 32, 64>}, {transform_indices = @transform_3, window_bounds = array<i64: 8, 64>}]} {
    %c0 = arith.constant 0 : index
    %c0_0 = arith.constant 0 : index
    %0 = vector.load %arg2[%c0, %c0_0] : memref<8x32xbf16, #tpu.memory_space<vmem>>, vector<8x32xbf16>
    %1 = arith.extf %0 : vector<8x32xbf16> to vector<8x32xf32>
    %2 = arith.mulf %1, %1 : vector<8x32xf32>
    %cst = arith.constant dense<0.000000e+00> : vector<8xf32>
    %3 = vector.multi_reduction <add>, %2, %cst [1] : vector<8x32xf32> to vector<8xf32>
    %4 = vector.shape_cast %3 : vector<8xf32> to vector<8x1xf32>
    %cst_1 = arith.constant 3.200000e+01 : f32
    %5 = vector.broadcast %cst_1 : f32 to vector<8x1xf32>
    %6 = arith.divf %4, %5 : vector<8x1xf32>
    %cst_2 = arith.constant 9.99999974E-6 : f32
    %7 = vector.broadcast %cst_2 : f32 to vector<8x1xf32>
    %8 = arith.addf %6, %7 : vector<8x1xf32>
    %9 = math.rsqrt %8 : vector<8x1xf32>
    %10 = vector.broadcast %9 : vector<8x1xf32> to vector<8x32xf32>
    %11 = arith.mulf %1, %10 : vector<8x32xf32>
    %c0_3 = arith.constant 0 : index
    %c0_4 = arith.constant 0 : index
    %12 = vector.load %arg3[%c0_3, %c0_4] : memref<1x32xf32, #tpu.memory_space<vmem>>, vector<1x32xf32>
    %13 = vector.broadcast %12 : vector<1x32xf32> to vector<8x32xf32>
    %14 = arith.mulf %11, %13 : vector<8x32xf32>
    %15 = arith.truncf %14 : vector<8x32xf32> to vector<8x32xbf16>
    %c0_5 = arith.constant 0 : index
    %c0_6 = arith.constant 0 : index
    %16 = vector.load %arg4[%c0_5, %c0_6] : memref<32x64xbf16, #tpu.memory_space<vmem>>, vector<32x64xbf16>
    %cst_7 = arith.constant dense<0.000000e+00> : vector<8x64xf32>
    %17 = tpu.matmul %15, %16, %cst_7 {dimension_numbers = #tpu.dot_dimension_numbers<[1], [0], [0], [1], [0, 0, 1, 1], [], []>} : vector<8x32xbf16>, vector<32x64xbf16>, vector<8x64xf32> -> vector<8x64xf32>
    %c0_8 = arith.constant 0 : index
    %c0_9 = arith.constant 0 : index
    %18 = vector.load %arg5[%c0_8, %c0_9] : memref<8x64xf32, #tpu.memory_space<vmem>>, vector<8x64xf32>
    tpu.vector_store %arg5[%c0_8, %c0_9], %17 {strides = array<i32>} : memref<8x64xf32, #tpu.memory_space<vmem>>, vector<8x64xf32>,
    return
  }
  func.func @transform_0(%arg0: i32, %arg1: i32) -> (i32, i32) {
    %c0_i32 = arith.constant 0 : i32
    %c0_i32_0 = arith.constant 0 : i32
    return %arg0, %c0_i32 : i32, i32
  }
  func.func @transform_1(%arg0: i32, %arg1: i32) -> (i32, i32) {
    %c0_i32 = arith.constant 0 : i32
    %c0_i32_0 = arith.constant 0 : i32
    %c0_i32_1 = arith.constant 0 : i32
    return %c0_i32, %c0_i32_0 : i32, i32
  }
  func.func @transform_2(%arg0: i32, %arg1: i32) -> (i32, i32) {
    %c0_i32 = arith.constant 0 : i32
    %c0_i32_0 = arith.constant 0 : i32
    return %c0_i32, %arg1 : i32, i32
  }
  func.func @transform_3(%arg0: i32, %arg1: i32) -> (i32, i32) {
    %c0_i32 = arith.constant 0 : i32
    return %arg0, %arg1 : i32, i32
  }
}

</mosaic_0001>

<llo_original>
// kernel: _lambda_.15
$region0: #{_lambda_.15}
  #allocation0 [shape = 'u32[]', space=smem, size = 0x4, offset = 0x4, fixed_abs, tag = 'smem constant byte address 0x4 - core index']
  #allocation1 [shape = 'u32[144,128]{1,0:T(1,128)}', space=vmem, size = 0x12000, scoped, tag = 'internal scratch']
  %s0 = inlined_call_operand.vmem [shape: bf16[16,32], index: 0, kind: input, shape index: {}]
  %s1 = inlined_call_operand.vmem [shape: f32[1,32], index: 1, kind: input, shape index: {}]
  %s2 = inlined_call_operand.vmem [shape: bf16[32,96], index: 2, kind: input, shape index: {}]
  %s3 = inlined_call_operand.vmem [shape: bf16[16,96], index: 3, kind: output, shape index: {}]
  %s4 = sld [smem:[#allocation0]]
  $region22: #{_lambda_.15} parent=0
    _
  %s6 = ssub.s32 1, %s4
  %s7 = scalar_select 0, %s6, %s4
  // Predicated region
  $region2: #{_lambda_.15} parent=0 // pred_check
    _
  $region3: #{_lambda_.15} parent=0 // pred_check_branch
    %9 = sbr.rel (0) target = $region5
  $region4: #{_lambda_.15} parent=0 // pred_region
    _
  $region5: #{_lambda_.15} parent=0 // pred_fallthru
    _
  // Predicated region
  $region6: #{_lambda_.15} parent=0 // pred_check
    _
  $region7: #{_lambda_.15} parent=0 // pred_check_branch
    %11 = sbr.rel (0) target = $region9
  $region8: #{_lambda_.15} parent=0 // pred_region
    _
  $region9: #{_lambda_.15} parent=0 // pred_fallthru
    _
  // Predicated region
  $region10: #{_lambda_.15} parent=0 // pred_check
    _
  $region11: #{_lambda_.15} parent=0 // pred_check_branch
    %13 = sbr.rel (0) target = $region13
  $region12: #{_lambda_.15} parent=0 // pred_region
    _
  $region13: #{_lambda_.15} parent=0 // pred_fallthru
    _
  %v15 = vld [vmem:[%s0] sm:$0xf]
  %v16 = vld [vmem:[%s0 + $0x4] sm:$0xf]
  %v17 = vunpack.c.l.bf16 %v15
  %v18 = vunpack.c.l.bf16 %v16
  %v19 = vmul.f32 %v17, %v17
  %v20 = vmul.f32 %v18, %v18
  %vm21 = vcmask 261120
  %v22 = vsel %vm21, %v19, 0.0
  %23 = vadd.xlane.f32.xlu0 %v22
  %v24 = vpop.xlane.xlu0 %23
  %v25 = vsel %vm21, %v20, 0.0
  %26 = vadd.xlane.f32.xlu0 %v25
  %v27 = vpop.xlane.xlu0 %26
  %v28 = vrcp.pop 32.0
  %v29 = vmul.f32 %v24, %v28
  %v30 = vmul.f32 %v27, %v28
  %v31 = vadd.f32 %v29, 1e-05
  %v32 = vadd.f32 %v30, 1e-05
  %v33 = vrsqrt.pop %v31
  %v34 = vrsqrt.pop %v32
  %v35 = vmul.f32 %v17, %v33
  %v36 = vmul.f32 %v18, %v34
  %v37 = vld [vmem:[%s1] sm:$0x1]
  %v39 = vlaneseq
  %v40 = vshrl.u32 %v39, 7
  %v41 = vsub.s32 0, %v40
  %v42 = vrot.slane %v37, %v41
  %v44 = vmul.f32 %v35, %v42
  %v45 = vmul.f32 %v36, %v42
  %v46 = vpack.c.bf16 %v45, %v44
  %v47 = vld [vmem:[%s2] sm:$0xf]
  %v48 = vld [vmem:[%s2 + $0x4] sm:$0xf]
  %v49 = vld [vmem:[%s2 + $0x8] sm:$0xf]
  %v50 = vld [vmem:[%s2 + $0xc] sm:$0xf]
  %v55 = vunpack.c.l.b16 %v47
  %v56 = vunpack.c.l.b16 %v48
  %v57 = vunpack.c.l.b16 %v49
  %v58 = vunpack.c.l.b16 %v50
  %v59 = vpack.c.b16 %v56, %v55
  %v60 = vpack.c.b16 %v58, %v57
  %v64 = vsel %vm21, %v46, 0
  %66 = vmatprep.subr.bf16.mxu0 0
  %67 = vmatpush1.bf16.msra.mxu0 0
  %68 = vmatprep.subr.bf16.mxu0 0
  %69 = vmatpush1.bf16.msra.mxu0 0
  %70 = vmatprep.subr.bf16.mxu0 0
  %71 = vmatpush1.bf16.msra.mxu0 0
  %72 = vmatprep.subr.bf16.mxu0 0
  %73 = vmatpush1.bf16.msra.mxu0 0
  %74 = vmatprep.subr.bf16.mxu0 0
  %75 = vmatpush1.bf16.msra.mxu0 0
  %76 = vmatprep.subr.bf16.mxu0 0
  %77 = vmatpush1.bf16.msra.mxu0 0
  %78 = vmatprep.subr.bf16.mxu0 0
  %79 = vmatpush1.bf16.msra.mxu0 %v60
  %80 = vmatprep.subr.bf16.mxu0 0
  %81 = vmatpush1.bf16.msra.mxu0 %v59
  %82 = vmatprep.subr.bf16.mxu0 0
  %83 = vmatpush2.bf16.msra.mxu0 0
  %84 = vmatprep.subr.bf16.mxu0 0
  %85 = vmatpush2.bf16.msra.mxu0 0
  %86 = vmatprep.subr.bf16.mxu0 0
  %87 = vmatpush2.bf16.msra.mxu0 0
  %88 = vmatprep.subr.bf16.mxu0 0
  %89 = vmatpush2.bf16.msra.mxu0 0
  %90 = vmatprep.subr.bf16.mxu0 0
  %91 = vmatpush2.bf16.msra.mxu0 0
  %92 = vmatprep.subr.bf16.mxu0 0
  %93 = vmatpush2.bf16.msra.mxu0 0
  %94 = vmatprep.subr.bf16.mxu0 0
  %95 = vmatpush2.bf16.msra.mxu0 0
  %96 = vmatprep.subr.bf16.mxu0 0
  %97 = vmatpush2.bf16.msra.mxu0 0
  %98 = vmatprep.mubr.bf16.mxu0 0
  %99 = vmatmul.mubr.bf16.gmra.mxu0 %v64
  %v100 = vpop.f32.mrf.mxu0
  %v101 = vadd.f32 0.0, %v100
  %v102 = vpop.f32.mrf.mxu0
  %v103 = vpop.f32.mrf.mxu0
  %v104 = vadd.f32 0.0, %v103
  %v105 = vpop.f32.mrf.mxu0
  %106 = vdwg.mxu0
  %v107 = vpack.c.bf16 %v104, %v101
  %v109 = vunpack.c.l.b16 %v107
  %v110 = vunpack.c.h.b16 %v107
  %v111 = vpack.c.b16 %v109, %v109
  %v112 = vpack.c.b16 %v110, %v110
  %vm115 = vcmask 781312
  %116 = vst.msk [vmem:[%s3] sm:$0xf] %vm115, %v111
  %117 = vst.msk [vmem:[%s3 + $0x4] sm:$0xf] %vm115, %v112
  // Predicated region
  $region14: #{_lambda_.15} parent=0 // pred_check
    _
  $region15: #{_lambda_.15} parent=0 // pred_check_branch
    %119 = sbr.rel (0) target = $region17
  $region16: #{_lambda_.15} parent=0 // pred_region
    _
  $region17: #{_lambda_.15} parent=0 // pred_fallthru
    _
  // Predicated region
  $region18: #{_lambda_.15} parent=0 // pred_check
    _
  $region19: #{_lambda_.15} parent=0 // pred_check_branch
    %121 = sbr.rel (0) target = $region21
  $region20: #{_lambda_.15} parent=0 // pred_region
    _
  $region21: #{_lambda_.15} parent=0 // pred_fallthru
    _

// kernel: _lambda_.17
$region0: #{_lambda_.17}
  #allocation0 [shape = 'u32[]', space=smem, size = 0x4, offset = 0x4, fixed_abs, tag = 'smem constant byte address 0x4 - core index']
  #allocation1 [shape = 'u32[144,128]{1,0:T(1,128)}', space=vmem, size = 0x12000, scoped, tag = 'internal scratch']
  %s0 = inlined_call_operand.vmem [shape: f32[8,4], index: 0, kind: input, shape index: {}]
  %s1 = inlined_call_operand.vmem [shape: f32[8,4], index: 1, kind: input, shape index: {}]
  %s2 = inlined_call_operand.vmem [shape: bf16[8,8,8], index: 2, kind: input, shape index: {}]
  %s3 = inlined_call_operand.vmem [shape: bf16[8,8,8], index: 3, kind: output, shape index: {}]
  %s4 = sld [smem:[#allocation0]]
  $region45: #{_lambda_.17} parent=0
    _
  %s6 = ssub.s32 1, %s4
  %s7 = scalar_select 0, %s6, %s4
  loop: start=0, step=1, limit=10
  $region2: #{_lambda_.17} parent=0 // loop_pre_header
    _
  $region3: #{_lambda_.17} parent=0 // loop_header
    %s9 = sphi 0, %s13
    %p10 = scmp.ge.s32.totalorder %s9, 10
    %s16 = sphi 0, %s28
    %s17 = sphi 0, %s24
    %s18 = sphi 0, %s16
    %s19 = sphi 0, %s17
    %s20 = sphi 0, %s18
    %s21 = sphi 0, %s19
    %s31 = sphi 0, %s33
    %s34 = sphi 0, %s31
    %s35 = sphi 0, %s34
    %s51 = sphi 0, %s35
    %s57 = sphi 0, %s59
    %s60 = sphi 0, %s57
    %s61 = sphi 0, %s60
    %s77 = sphi 0, %s61
    %s85 = sphi 0, %s87
    %s88 = sphi 0, %s85
    %s89 = sphi 0, %s88
    %s105 = sphi 0, %s89
    %s113 = sphi 0, %s115
    %s116 = sphi 0, %s113
    %s117 = sphi 0, %s116
    %s133 = sphi 0, %s117
  $region4: #{_lambda_.17} parent=0 // loop_header_branch
    %12 = sbr.rel (%p10) target = $region8
  $region5: #{_lambda_.17} parent=0 // loop_body
    %s14 = ssub.s32 %s9, 1
    %s15 = ssub.s32 %s9, 2
    %s22 = sadd.s32 1, %s17
    %p23 = scmp.ge.s32.totalorder %s22, 1
    %s24 = scalar_select %p23, 0, %s22
    %s25 = sadd.s32 1, %s16
    %s26 = scalar_select %p23, %s25, %s16
    %p27 = scmp.ge.s32.totalorder %s26, 8
    %s28 = scalar_select %p27, 0, %s26
    %s29 = ssub.s32 %s17, %s24
    %p30 = scmp.eq.s32.totalorder %s29, 0
    %s32 = sadd.s32 %s31, 1
    %s33 = scalar_select %p30, %s31, %s32
    %p36 = pneg %p30
    %p37 = scmp.eq.s32.totalorder %s9, 7
    %p38 = por %p36, %p37
    %p39 = scmp.ne.s32.totalorder %s31, %s34
    %p40 = scmp.eq.s32.totalorder %s9, 0
    %p41 = por %p39, %p40
    %p42 = scmp.ne.s32.totalorder %s31, %s34
    %p43 = scmp.eq.s32.totalorder %s14, 7
    %p44 = por %p42, %p43
    %p45 = scmp.ne.s32.totalorder %s34, %s35
    %p46 = scmp.eq.s32.totalorder %s14, 0
    %p47 = por %p45, %p46
    %p48 = scmp.ne.s32.totalorder %s34, %s35
    %p49 = scmp.eq.s32.totalorder %s15, 7
    %p50 = por %p48, %p49
    %p52 = scmp.ne.s32.totalorder %s35, %s51
    %p53 = scmp.eq.s32.totalorder %s15, 0
    %p54 = por %p52, %p53
    %s55 = ssub.s32 %s17, %s24
    %p56 = scmp.eq.s32.totalorder %s55, 0
    %s58 = sadd.s32 %s57, 1
    %s59 = scalar_select %p56, %s57, %s58
    %p62 = pneg %p56
    %p63 = scmp.eq.s32.totalorder %s9, 7
    %p64 = por %p62, %p63
    %p65 = scmp.ne.s32.totalorder %s57, %s60
    %p66 = scmp.eq.s32.totalorder %s9, 0
    %p67 = por %p65, %p66
    %p68 = scmp.ne.s32.totalorder %s57, %s60
    %p69 = scmp.eq.s32.totalorder %s14, 7
    %p70 = por %p68, %p69
    %p71 = scmp.ne.s32.totalorder %s60, %s61
    %p72 = scmp.eq.s32.totalorder %s14, 0
    %p73 = por %p71, %p72
    %p74 = scmp.ne.s32.totalorder %s60, %s61
    %p75 = scmp.eq.s32.totalorder %s15, 7
    %p76 = por %p74, %p75
    %p78 = scmp.ne.s32.totalorder %s61, %s77
    %p79 = scmp.eq.s32.totalorder %s15, 0
    %p80 = por %p78, %p79
    %s81 = ssub.s32 %s16, %s28
    %s82 = ssub.s32 %s17, %s24
    %s83 = sor.u32 %s81, %s82
    %p84 = scmp.eq.s32.totalorder %s83, 0
    %s86 = sadd.s32 %s85, 1
    %s87 = scalar_select %p84, %s85, %s86
    %p90 = pneg %p84
    %p91 = scmp.eq.s32.totalorder %s9, 7
    %p92 = por %p90, %p91
    %p93 = scmp.ne.s32.totalorder %s85, %s88
    %p94 = scmp.eq.s32.totalorder %s9, 0
    %p95 = por %p93, %p94
    %p96 = scmp.ne.s32.totalorder %s85, %s88
    %p97 = scmp.eq.s32.totalorder %s14, 7
    %p98 = por %p96, %p97
    %p99 = scmp.ne.s32.totalorder %s88, %s89
    %p100 = scmp.eq.s32.totalorder %s14, 0
    %p101 = por %p99, %p100
    %p102 = scmp.ne.s32.totalorder %s88, %s89
    %p103 = scmp.eq.s32.totalorder %s15, 7
    %p104 = por %p102, %p103
    %p106 = scmp.ne.s32.totalorder %s89, %s105
    %p107 = scmp.eq.s32.totalorder %s15, 0
    %p108 = por %p106, %p107
    %s109 = ssub.s32 %s16, %s28
    %s110 = ssub.s32 %s17, %s24
    %s111 = sor.u32 %s109, %s110
    %p112 = scmp.eq.s32.totalorder %s111, 0
    %s114 = sadd.s32 %s113, 1
    %s115 = scalar_select %p112, %s113, %s114
    %p118 = pneg %p112
    %p119 = scmp.eq.s32.totalorder %s9, 7
    %p120 = por %p118, %p119
    %p121 = scmp.ne.s32.totalorder %s113, %s116
    %p122 = scmp.eq.s32.totalorder %s9, 0
    %p123 = por %p121, %p122
    %p124 = scmp.ne.s32.totalorder %s113, %s116
    %p125 = scmp.eq.s32.totalorder %s14, 7
    %p126 = por %p124, %p125
    %p127 = scmp.ne.s32.totalorder %s116, %s117
    %p128 = scmp.eq.s32.totalorder %s14, 0
    %p129 = por %p127, %p128
    %p130 = scmp.ne.s32.totalorder %s116, %s117
    %p131 = scmp.eq.s32.totalorder %s15, 7
    %p132 = por %p130, %p131
    %p134 = scmp.ne.s32.totalorder %s117, %s133
    %p135 = scmp.eq.s32.totalorder %s15, 0
    %p136 = por %p134, %p135
    %p137 = scmp.le.s32.totalorder 1, %s9
    %p138 = scmp.lt.s32.totalorder %s9, 9
    %p139 = pnand %p137, %p138
    %p140 = pneg %p139
    // Predicated region
    $region9: #{_lambda_.17} parent=5 // pred_check
      _
    $region10: #{_lambda_.17} parent=5 // pred_check_branch
      %142 = sbr.rel (%p139) target = $region12
    $region11: #{_lambda_.17} parent=5 // pred_region
      %s143 = ssub.s32 %s9, 1
      // Predicated region
      $region13: #{_lambda_.17} parent=11 // pred_check
        %p144 = pneg %p47
      $region14: #{_lambda_.17} parent=11 // pred_check_branch
        %146 = sbr.rel (%p144) target = $region16
      $region15: #{_lambda_.17} parent=11 // pred_region
        %p147 = scmp.lt.s32.totalorder %s19, 0
        %s148 = scalar_select %p147, %s19, 0
        %s149 = smul.addr %s148, 8
        %s150 = scalar_lea.vmem %s0, %s149
      $region16: #{_lambda_.17} parent=11 // pred_fallthru
        _
      // Predicated region
      $region17: #{_lambda_.17} parent=11 // pred_check
        %p151 = pneg %p73
      $region18: #{_lambda_.17} parent=11 // pred_check_branch
        %153 = sbr.rel (%p151) target = $region20
      $region19: #{_lambda_.17} parent=11 // pred_region
        %p154 = scmp.lt.s32.totalorder %s19, 0
        %s155 = scalar_select %p154, %s19, 0
        %s156 = smul.addr %s155, 8
        %s157 = scalar_lea.vmem %s1, %s156
      $region20: #{_lambda_.17} parent=11 // pred_fallthru
        _
    $region12: #{_lambda_.17} parent=5 // pred_fallthru
      _
    %p158 = scmp.lt.s32.totalorder %s9, 8
    // Predicated region
    $region21: #{_lambda_.17} parent=5 // pred_check
      %p159 = pneg %p158
    $region22: #{_lambda_.17} parent=5 // pred_check_branch
      %161 = sbr.rel (%p159) target = $region24
    $region23: #{_lambda_.17} parent=5 // pred_region
      // Predicated region
      $region25: #{_lambda_.17} parent=23 // pred_check
        %p162 = pneg %p95
      $region26: #{_lambda_.17} parent=23 // pred_check_branch
        %164 = sbr.rel (%p162) target = $region28
      $region27: #{_lambda_.17} parent=23 // pred_region
        %p165 = scmp.lt.s32.totalorder %s16, 7
        %s166 = scalar_select %p165, %s16, 7
        %p167 = scmp.lt.s32.totalorder %s17, 0
        %s168 = scalar_select %p167, %s17, 0
        %s169 = sadd.s32 %s168, %s166
        %s170 = smul.addr %s169, 4
        %s171 = scalar_lea.vmem %s2, %s170
      $region28: #{_lambda_.17} parent=23 // pred_fallthru
        _
    $region24: #{_lambda_.17} parent=5 // pred_fallthru
      _
    %p172 = scmp.le.s32.totalorder 1, %s9
    %p173 = scmp.lt.s32.totalorder %s9, 9
    %p174 = pnand %p172, %p173
    %p175 = pneg %p174
    // Predicated region
    $region29: #{_lambda_.17} parent=5 // pred_check
      _
    $region30: #{_lambda_.17} parent=5 // pred_check_branch
      %177 = sbr.rel (%p174) target = $region32
    $region31: #{_lambda_.17} parent=5 // pred_region
      %s178 = ssub.s32 %s9, 1
      %p179 = scmp.lt.s32.totalorder %s19, 0
      %s180 = scalar_select %p179, %s19, 0
      %s181 = smul.addr %s180, 8
      %s182 = scalar_lea.vmem %s0, %s181
      %p183 = pneg %p47
      %p184 = pneg %p44
      %p185 = scmp.lt.s32.totalorder %s19, 0
      %s186 = scalar_select %p185, %s19, 0
      %s187 = smul.addr %s186, 8
      %s188 = scalar_lea.vmem %s1, %s187
      %p189 = pneg %p73
      %p190 = pneg %p70
      %p191 = scmp.lt.s32.totalorder %s18, 7
      %s192 = scalar_select %p191, %s18, 7
      %p193 = scmp.lt.s32.totalorder %s19, 0
      %s194 = scalar_select %p193, %s19, 0
      %s195 = sadd.s32 %s194, %s192
      %s196 = smul.addr %s195, 4
      %s197 = scalar_lea.vmem %s2, %s196
      %p198 = pneg %p101
      %p199 = pneg %p98
      %p200 = pneg %p129
      %p201 = pneg %p126
      %p202 = scmp.lt.s32.totalorder %s18, 7
      %s203 = scalar_select %p202, %s18, 7
      %p204 = scmp.lt.s32.totalorder %s19, 0
      %s205 = scalar_select %p204, %s19, 0
      %s206 = sadd.s32 %s205, %s203
      %s207 = smul.addr %s206, 4
      %s208 = scalar_lea.vmem %s3, %s207
      %p209 = scmp.lt.s32.totalorder %s19, 0
      %s210 = scalar_select %p209, %s19, 0
      %s211 = smul.addr %s210, 8
      %s212 = scalar_lea.vmem %s0, %s211
      %p213 = scmp.lt.s32.totalorder %s19, 0
      %s214 = scalar_select %p213, %s19, 0
      %s215 = smul.addr %s214, 8
      %s216 = scalar_lea.vmem %s1, %s215
      %p217 = scmp.lt.s32.totalorder %s18, 7
      %s218 = scalar_select %p217, %s18, 7
      %p219 = scmp.lt.s32.totalorder %s19, 0
      %s220 = scalar_select %p219, %s19, 0
      %s221 = sadd.s32 %s220, %s218
      %s222 = smul.addr %s221, 4
      %s223 = scalar_lea.vmem %s2, %s222
      %p224 = scmp.lt.s32.totalorder %s18, 7
      %s225 = scalar_select %p224, %s18, 7
      %p226 = scmp.lt.s32.totalorder %s19, 0
      %s227 = scalar_select %p226, %s19, 0
      %s228 = sadd.s32 %s227, %s225
      %s229 = smul.addr %s228, 4
      %s230 = scalar_lea.vmem %s3, %s229
      %v231 = vld [vmem:[%s223] sm:$0xf]
      %v232 = vunpack.c.l.bf16 %v231
      %v233 = vld [vmem:[%s212] sm:$0xff]
      %v234 = vld [vmem:[%s216] sm:$0xff]
      %v235 = vmul.f32 %v232, %v233
      %237 = vrot.lane.b32.xlu0 %v234, 4
      %v238 = vpop.permute.xlu0 %237
      %v240 = vmul.f32 %v232, %v238
      %242 = vrot.lane.b32.xlu0 %v240, 124
      %v243 = vpop.permute.xlu0 %242
      %v245 = vsub.f32 %v235, %v243
      %v246 = vpack.c.bf16 %v245, %v245
      %vm247 = vcmask 27648
      %248 = vst.msk [vmem:[%s230] sm:$0xf] %vm247, %v246
      %250 = vrot.lane.b32.xlu0 %v233, 4
      %v251 = vpop.permute.xlu0 %250
      %v253 = vmul.f32 %v232, %v251
      %v254 = vmul.f32 %v232, %v234
      %256 = vrot.lane.b32.xlu0 %v254, 4
      %v257 = vpop.permute.xlu0 %256
      %v259 = vadd.f32 %v253, %v257
      %v260 = vpack.c.bf16 %v259, %v259
      %vm261 = vcmask 60448
      %262 = vst.msk [vmem:[%s230] sm:$0xf] %vm261, %v260
      %p263 = scmp.lt.s32.totalorder %s18, 7
      %s264 = scalar_select %p263, %s18, 7
      %p265 = scmp.lt.s32.totalorder %s19, 0
      %s266 = scalar_select %p265, %s19, 0
      %s267 = sadd.s32 %s266, %s264
      %s268 = smul.addr %s267, 4
      %s269 = scalar_lea.vmem %s3, %s268
      // Predicated region
      $region33: #{_lambda_.17} parent=31 // pred_check
        %p270 = pneg %p126
      $region34: #{_lambda_.17} parent=31 // pred_check_branch
        %272 = sbr.rel (%p270) target = $region36
      $region35: #{_lambda_.17} parent=31 // pred_region
        _
      $region36: #{_lambda_.17} parent=31 // pred_fallthru
        _
    $region32: #{_lambda_.17} parent=5 // pred_fallthru
      _
    %p273 = scmp.le.s32.totalorder 2, %s9
    // Predicated region
    $region37: #{_lambda_.17} parent=5 // pred_check
      %p274 = pneg %p273
    $region38: #{_lambda_.17} parent=5 // pred_check_branch
      %276 = sbr.rel (%p274) target = $region40
    $region39: #{_lambda_.17} parent=5 // pred_region
      %s277 = ssub.s32 %s9, 2
      // Predicated region
      $region41: #{_lambda_.17} parent=39 // pred_check
        %p278 = pneg %p132
      $region42: #{_lambda_.17} parent=39 // pred_check_branch
        %280 = sbr.rel (%p278) target = $region44
      $region43: #{_lambda_.17} parent=39 // pred_region
        %p281 = scmp.lt.s32.totalorder %s20, 7
        %s282 = scalar_select %p281, %s20, 7
        %p283 = scmp.lt.s32.totalorder %s21, 0
        %s284 = scalar_select %p283, %s21, 0
        %s285 = sadd.s32 %s284, %s282
        %s286 = smul.addr %s285, 4
        %s287 = scalar_lea.vmem %s3, %s286
      $region44: #{_lambda_.17} parent=39 // pred_fallthru
        _
    $region40: #{_lambda_.17} parent=5 // pred_fallthru
      _
  $region6: #{_lambda_.17} parent=0 // loop_footer
    %s13 = sadd.s32 1, %s9
  $region7: #{_lambda_.17} parent=0 // loop_footer_branch
    %8 = sbr.rel target = $region3
  $region8: #{_lambda_.17} parent=0 // loop_exit
    _

// kernel: _lambda_.18
$region0: #{_lambda_.18}
  #allocation0 [shape = 'u32[]', space=smem, size = 0x4, offset = 0x4, fixed_abs, tag = 'smem constant byte address 0x4 - core index']
  #allocation1 [shape = 'u32[144,128]{1,0:T(1,128)}', space=vmem, size = 0x12000, scoped, tag = 'internal scratch']
  #allocation2 [shape = 'f32[1,8,1]{2,1,0:T(8,128)}', space=vmem, size = 0x1000, scoped, tag = 'scratch operand']
  #allocation3 [shape = 'f32[1,8,1]{2,1,0:T(8,128)}', space=vmem, size = 0x1000, scoped, tag = 'scratch operand']
  #allocation4 [shape = 'f32[1,8,8]{2,1,0:T(8,128)}', space=vmem, size = 0x1000, scoped, tag = 'scratch operand']
  %s0 = inlined_call_operand.vmem [shape: bf16[8,8,8], index: 0, kind: input, shape index: {}]
  %s1 = inlined_call_operand.vmem [shape: bf16[8,8,8], index: 1, kind: input, shape index: {}]
  %s2 = inlined_call_operand.vmem [shape: bf16[8,8,8], index: 2, kind: input, shape index: {}]
  %s3 = inlined_call_operand.vmem [shape: bf16[8,8,8], index: 3, kind: output, shape index: {}]
  %s4 = sld [smem:[#allocation0]]
  $region57: #{_lambda_.18} parent=0
    _
  %s6 = ssub.s32 1, %s4
  %s7 = scalar_select 0, %s6, %s4
  loop: start=0, step=1, limit=10
  $region2: #{_lambda_.18} parent=0 // loop_pre_header
    _
  $region3: #{_lambda_.18} parent=0 // loop_header
    %s9 = sphi 0, %s13
    %p10 = scmp.ge.s32.totalorder %s9, 10
    %s16 = sphi 0, %s35
    %s17 = sphi 0, %s31
    %s18 = sphi 0, %s27
    %s19 = sphi 0, %s16
    %s20 = sphi 0, %s17
    %s21 = sphi 0, %s18
    %s22 = sphi 0, %s19
    %s23 = sphi 0, %s20
    %s24 = sphi 0, %s21
    %s40 = sphi 0, %s42
    %s43 = sphi 0, %s40
    %s44 = sphi 0, %s43
    %s60 = sphi 0, %s44
    %s68 = sphi 0, %s70
    %s71 = sphi 0, %s68
    %s72 = sphi 0, %s71
    %s88 = sphi 0, %s72
    %s96 = sphi 0, %s98
    %s99 = sphi 0, %s96
    %s100 = sphi 0, %s99
    %s116 = sphi 0, %s100
    %s124 = sphi 0, %s126
    %s127 = sphi 0, %s124
    %s128 = sphi 0, %s127
    %s144 = sphi 0, %s128
  $region4: #{_lambda_.18} parent=0 // loop_header_branch
    %12 = sbr.rel (%p10) target = $region8
  $region5: #{_lambda_.18} parent=0 // loop_body
    %s14 = ssub.s32 %s9, 1
    %s15 = ssub.s32 %s9, 2
    %s25 = sadd.s32 1, %s18
    %p26 = scmp.ge.s32.totalorder %s25, 1
    %s27 = scalar_select %p26, 0, %s25
    %s28 = sadd.s32 1, %s17
    %s29 = scalar_select %p26, %s28, %s17
    %p30 = scmp.ge.s32.totalorder %s29, 1
    %s31 = scalar_select %p30, 0, %s29
    %s32 = sadd.s32 1, %s16
    %s33 = scalar_select %p30, %s32, %s16
    %p34 = scmp.ge.s32.totalorder %s33, 8
    %s35 = scalar_select %p34, 0, %s33
    %s36 = ssub.s32 %s16, %s35
    %s37 = ssub.s32 %s17, %s31
    %s38 = sor.u32 %s36, %s37
    %p39 = scmp.eq.s32.totalorder %s38, 0
    %s41 = sadd.s32 %s40, 1
    %s42 = scalar_select %p39, %s40, %s41
    %p45 = pneg %p39
    %p46 = scmp.eq.s32.totalorder %s9, 7
    %p47 = por %p45, %p46
    %p48 = scmp.ne.s32.totalorder %s40, %s43
    %p49 = scmp.eq.s32.totalorder %s9, 0
    %p50 = por %p48, %p49
    %p51 = scmp.ne.s32.totalorder %s40, %s43
    %p52 = scmp.eq.s32.totalorder %s14, 7
    %p53 = por %p51, %p52
    %p54 = scmp.ne.s32.totalorder %s43, %s44
    %p55 = scmp.eq.s32.totalorder %s14, 0
    %p56 = por %p54, %p55
    %p57 = scmp.ne.s32.totalorder %s43, %s44
    %p58 = scmp.eq.s32.totalorder %s15, 7
    %p59 = por %p57, %p58
    %p61 = scmp.ne.s32.totalorder %s44, %s60
    %p62 = scmp.eq.s32.totalorder %s15, 0
    %p63 = por %p61, %p62
    %s64 = ssub.s32 %s16, %s35
    %s65 = ssub.s32 %s18, %s27
    %s66 = sor.u32 %s64, %s65
    %p67 = scmp.eq.s32.totalorder %s66, 0
    %s69 = sadd.s32 %s68, 1
    %s70 = scalar_select %p67, %s68, %s69
    %p73 = pneg %p67
    %p74 = scmp.eq.s32.totalorder %s9, 7
    %p75 = por %p73, %p74
    %p76 = scmp.ne.s32.totalorder %s68, %s71
    %p77 = scmp.eq.s32.totalorder %s9, 0
    %p78 = por %p76, %p77
    %p79 = scmp.ne.s32.totalorder %s68, %s71
    %p80 = scmp.eq.s32.totalorder %s14, 7
    %p81 = por %p79, %p80
    %p82 = scmp.ne.s32.totalorder %s71, %s72
    %p83 = scmp.eq.s32.totalorder %s14, 0
    %p84 = por %p82, %p83
    %p85 = scmp.ne.s32.totalorder %s71, %s72
    %p86 = scmp.eq.s32.totalorder %s15, 7
    %p87 = por %p85, %p86
    %p89 = scmp.ne.s32.totalorder %s72, %s88
    %p90 = scmp.eq.s32.totalorder %s15, 0
    %p91 = por %p89, %p90
    %s92 = ssub.s32 %s16, %s35
    %s93 = ssub.s32 %s18, %s27
    %s94 = sor.u32 %s92, %s93
    %p95 = scmp.eq.s32.totalorder %s94, 0
    %s97 = sadd.s32 %s96, 1
    %s98 = scalar_select %p95, %s96, %s97
    %p101 = pneg %p95
    %p102 = scmp.eq.s32.totalorder %s9, 7
    %p103 = por %p101, %p102
    %p104 = scmp.ne.s32.totalorder %s96, %s99
    %p105 = scmp.eq.s32.totalorder %s9, 0
    %p106 = por %p104, %p105
    %p107 = scmp.ne.s32.totalorder %s96, %s99
    %p108 = scmp.eq.s32.totalorder %s14, 7
    %p109 = por %p107, %p108
    %p110 = scmp.ne.s32.totalorder %s99, %s100
    %p111 = scmp.eq.s32.totalorder %s14, 0
    %p112 = por %p110, %p111
    %p113 = scmp.ne.s32.totalorder %s99, %s100
    %p114 = scmp.eq.s32.totalorder %s15, 7
    %p115 = por %p113, %p114
    %p117 = scmp.ne.s32.totalorder %s100, %s116
    %p118 = scmp.eq.s32.totalorder %s15, 0
    %p119 = por %p117, %p118
    %s120 = ssub.s32 %s16, %s35
    %s121 = ssub.s32 %s17, %s31
    %s122 = sor.u32 %s120, %s121
    %p123 = scmp.eq.s32.totalorder %s122, 0
    %s125 = sadd.s32 %s124, 1
    %s126 = scalar_select %p123, %s124, %s125
    %p129 = pneg %p123
    %p130 = scmp.eq.s32.totalorder %s9, 7
    %p131 = por %p129, %p130
    %p132 = scmp.ne.s32.totalorder %s124, %s127
    %p133 = scmp.eq.s32.totalorder %s9, 0
    %p134 = por %p132, %p133
    %p135 = scmp.ne.s32.totalorder %s124, %s127
    %p136 = scmp.eq.s32.totalorder %s14, 7
    %p137 = por %p135, %p136
    %p138 = scmp.ne.s32.totalorder %s127, %s128
    %p139 = scmp.eq.s32.totalorder %s14, 0
    %p140 = por %p138, %p139
    %p141 = scmp.ne.s32.totalorder %s127, %s128
    %p142 = scmp.eq.s32.totalorder %s15, 7
    %p143 = por %p141, %p142
    %p145 = scmp.ne.s32.totalorder %s128, %s144
    %p146 = scmp.eq.s32.totalorder %s15, 0
    %p147 = por %p145, %p146
    %p148 = scmp.le.s32.totalorder 1, %s9
    %p149 = scmp.lt.s32.totalorder %s9, 9
    %p150 = pnand %p148, %p149
    %p151 = pneg %p150
    // Predicated region
    $region9: #{_lambda_.18} parent=5 // pred_check
      _
    $region10: #{_lambda_.18} parent=5 // pred_check_branch
      %153 = sbr.rel (%p150) target = $region12
    $region11: #{_lambda_.18} parent=5 // pred_region
      %s154 = ssub.s32 %s9, 1
    $region12: #{_lambda_.18} parent=5 // pred_fallthru
      _
    %p155 = scmp.lt.s32.totalorder %s9, 8
    // Predicated region
    $region13: #{_lambda_.18} parent=5 // pred_check
      %p156 = pneg %p155
    $region14: #{_lambda_.18} parent=5 // pred_check_branch
      %158 = sbr.rel (%p156) target = $region16
    $region15: #{_lambda_.18} parent=5 // pred_region
      // Predicated region
      $region17: #{_lambda_.18} parent=15 // pred_check
        %p159 = pneg %p50
      $region18: #{_lambda_.18} parent=15 // pred_check_branch
        %161 = sbr.rel (%p159) target = $region20
      $region19: #{_lambda_.18} parent=15 // pred_region
        %p162 = scmp.lt.s32.totalorder %s16, 7
        %s163 = scalar_select %p162, %s16, 7
        %p164 = scmp.lt.s32.totalorder %s17, 0
        %s165 = scalar_select %p164, %s17, 0
        %s166 = sadd.s32 %s165, %s163
        %s167 = smul.addr %s166, 4
        %s168 = scalar_lea.vmem %s0, %s167
      $region20: #{_lambda_.18} parent=15 // pred_fallthru
        _
      // Predicated region
      $region21: #{_lambda_.18} parent=15 // pred_check
        %p169 = pneg %p78
      $region22: #{_lambda_.18} parent=15 // pred_check_branch
        %171 = sbr.rel (%p169) target = $region24
      $region23: #{_lambda_.18} parent=15 // pred_region
        %p172 = scmp.lt.s32.totalorder %s16, 7
        %s173 = scalar_select %p172, %s16, 7
        %p174 = scmp.lt.s32.totalorder %s18, 0
        %s175 = scalar_select %p174, %s18, 0
        %s176 = sadd.s32 %s175, %s173
        %s177 = smul.addr %s176, 4
        %s178 = scalar_lea.vmem %s1, %s177
      $region24: #{_lambda_.18} parent=15 // pred_fallthru
        _
      // Predicated region
      $region25: #{_lambda_.18} parent=15 // pred_check
        %p179 = pneg %p106
      $region26: #{_lambda_.18} parent=15 // pred_check_branch
        %181 = sbr.rel (%p179) target = $region28
      $region27: #{_lambda_.18} parent=15 // pred_region
        %p182 = scmp.lt.s32.totalorder %s16, 7
        %s183 = scalar_select %p182, %s16, 7
        %p184 = scmp.lt.s32.totalorder %s18, 0
        %s185 = scalar_select %p184, %s18, 0
        %s186 = sadd.s32 %s185, %s183
        %s187 = smul.addr %s186, 4
        %s188 = scalar_lea.vmem %s2, %s187
      $region28: #{_lambda_.18} parent=15 // pred_fallthru
        _
    $region16: #{_lambda_.18} parent=5 // pred_fallthru
      _
    %p189 = scmp.le.s32.totalorder 1, %s9
    %p190 = scmp.lt.s32.totalorder %s9, 9
    %p191 = pnand %p189, %p190
    %p192 = pneg %p191
    // Predicated region
    $region29: #{_lambda_.18} parent=5 // pred_check
      _
    $region30: #{_lambda_.18} parent=5 // pred_check_branch
      %194 = sbr.rel (%p191) target = $region32
    $region31: #{_lambda_.18} parent=5 // pred_region
      %s195 = ssub.s32 %s9, 1
      %p196 = scmp.lt.s32.totalorder %s19, 7
      %s197 = scalar_select %p196, %s19, 7
      %p198 = scmp.lt.s32.totalorder %s20, 0
      %s199 = scalar_select %p198, %s20, 0
      %s200 = sadd.s32 %s199, %s197
      %s201 = smul.addr %s200, 4
      %s202 = scalar_lea.vmem %s0, %s201
      %p203 = pneg %p56
      %p204 = pneg %p53
      %p205 = scmp.lt.s32.totalorder %s19, 7
      %s206 = scalar_select %p205, %s19, 7
      %p207 = scmp.lt.s32.totalorder %s21, 0
      %s208 = scalar_select %p207, %s21, 0
      %s209 = sadd.s32 %s208, %s206
      %s210 = smul.addr %s209, 4
      %s211 = scalar_lea.vmem %s1, %s210
      %p212 = pneg %p84
      %p213 = pneg %p81
      %p214 = scmp.lt.s32.totalorder %s19, 7
      %s215 = scalar_select %p214, %s19, 7
      %p216 = scmp.lt.s32.totalorder %s21, 0
      %s217 = scalar_select %p216, %s21, 0
      %s218 = sadd.s32 %s217, %s215
      %s219 = smul.addr %s218, 4
      %s220 = scalar_lea.vmem %s2, %s219
      %p221 = pneg %p112
      %p222 = pneg %p109
      %p223 = pneg %p140
      %p224 = pneg %p137
      %p225 = scmp.lt.s32.totalorder %s19, 7
      %s226 = scalar_select %p225, %s19, 7
      %p227 = scmp.lt.s32.totalorder %s20, 0
      %s228 = scalar_select %p227, %s20, 0
      %s229 = sadd.s32 %s228, %s226
      %s230 = smul.addr %s229, 4
      %s231 = scalar_lea.vmem %s3, %s230
      %p232 = scmp.lt.s32.totalorder %s19, 7
      %s233 = scalar_select %p232, %s19, 7
      %p234 = scmp.lt.s32.totalorder %s20, 0
      %s235 = scalar_select %p234, %s20, 0
      %s236 = sadd.s32 %s235, %s233
      %s237 = smul.addr %s236, 4
      %s238 = scalar_lea.vmem %s0, %s237
      %p239 = scmp.lt.s32.totalorder %s19, 7
      %s240 = scalar_select %p239, %s19, 7
      %p241 = scmp.lt.s32.totalorder %s21, 0
      %s242 = scalar_select %p241, %s21, 0
      %s243 = sadd.s32 %s242, %s240
      %s244 = smul.addr %s243, 4
      %s245 = scalar_lea.vmem %s1, %s244
      %p246 = scmp.lt.s32.totalorder %s19, 7
      %s247 = scalar_select %p246, %s19, 7
      %p248 = scmp.lt.s32.totalorder %s21, 0
      %s249 = scalar_select %p248, %s21, 0
      %s250 = sadd.s32 %s249, %s247
      %s251 = smul.addr %s250, 4
      %s252 = scalar_lea.vmem %s2, %s251
      %p253 = scmp.lt.s32.totalorder %s19, 7
      %s254 = scalar_select %p253, %s19, 7
      %p255 = scmp.lt.s32.totalorder %s20, 0
      %s256 = scalar_select %p255, %s20, 0
      %s257 = sadd.s32 %s256, %s254
      %s258 = smul.addr %s257, 4
      %s259 = scalar_lea.vmem %s3, %s258
      %p261 = scmp.eq.s32.totalorder %s21, 0
      // Predicated region
      $region33: #{_lambda_.18} parent=31 // pred_check
        %p262 = pneg %p261
      $region34: #{_lambda_.18} parent=31 // pred_check_branch
        %264 = sbr.rel (%p262) target = $region36
      $region35: #{_lambda_.18} parent=31 // pred_region
        %vm265 = vcmask 7168
        %266 = vst.msk [vmem:[#allocation2] sm:$0xff] %vm265, -inf
        %267 = vst.msk [vmem:[#allocation3] sm:$0xff] %vm265, 0.0
        %vm268 = vcmask 64512
        %269 = vst.msk [vmem:[#allocation4] sm:$0xff] %vm268, 0.0
      $region36: #{_lambda_.18} parent=31 // pred_fallthru
        _
      %s270 = smul.u32 %s21, 8
      %s271 = sadd.s32 %s20, 1
      %s272 = smul.u32 %s271, 8
      %p273 = scmp.lt.s32.totalorder %s270, %s272
      // Predicated region
      $region37: #{_lambda_.18} parent=31 // pred_check
        %p274 = pneg %p273
      $region38: #{_lambda_.18} parent=31 // pred_check_branch
        %276 = sbr.rel (%p274) target = $region40
      $region39: #{_lambda_.18} parent=31 // pred_region
        %v277 = vld [vmem:[%s238] sm:$0xf]
        %v278 = vld [vmem:[%s245] sm:$0xf]
        %vm279 = vcmask 64512
        %v281 = vsel %vm279, %v277, 0
        %v284 = vsel %vm279, %v278, 0
        %286 = vmatprep.subr.bf16.mxu0 0
        %287 = vmatpush1.bf16.xpose.msra.mxu0 0
        %288 = vmatprep.subr.bf16.mxu0 0
        %289 = vmatpush1.bf16.xpose.msra.mxu0 0
        %290 = vmatprep.subr.bf16.mxu0 0
        %291 = vmatpush1.bf16.xpose.msra.mxu0 0
        %292 = vmatprep.subr.bf16.mxu0 0
        %293 = vmatpush1.bf16.xpose.msra.mxu0 0
        %294 = vmatprep.subr.bf16.mxu0 0
        %295 = vmatpush1.bf16.xpose.msra.mxu0 0
        %296 = vmatprep.subr.bf16.mxu0 0
        %297 = vmatpush1.bf16.xpose.msra.mxu0 0
        %298 = vmatprep.subr.bf16.mxu0 0
        %299 = vmatpush1.bf16.xpose.msra.mxu0 0
        %300 = vmatprep.subr.bf16.mxu0 0
        %301 = vmatpush1.bf16.xpose.msra.mxu0 %v284
        %302 = vmatprep.subr.bf16.mxu0 0
        %303 = vmatpush2.bf16.xpose.msra.mxu0 0
        %304 = vmatprep.subr.bf16.mxu0 0
        %305 = vmatpush2.bf16.xpose.msra.mxu0 0
        %306 = vmatprep.subr.bf16.mxu0 0
        %307 = vmatpush2.bf16.xpose.msra.mxu0 0
        %308 = vmatprep.subr.bf16.mxu0 0
        %309 = vmatpush2.bf16.xpose.msra.mxu0 0
        %310 = vmatprep.subr.bf16.mxu0 0
        %311 = vmatpush2.bf16.xpose.msra.mxu0 0
        %312 = vmatprep.subr.bf16.mxu0 0
        %313 = vmatpush2.bf16.xpose.msra.mxu0 0
        %314 = vmatprep.subr.bf16.mxu0 0
        %315 = vmatpush2.bf16.xpose.msra.mxu0 0
        %316 = vmatprep.subr.bf16.mxu0 0
        %317 = vmatpush2.bf16.xpose.msra.mxu0 0
        %318 = vmatprep.mubr.bf16.mxu0 0
        %319 = vmatmul.mubr.bf16.gmra.mxu0 %v281
        %v320 = vpop.f32.mrf.mxu0
        %v321 = vadd.f32 0.0, %v320
        %v322 = vpop.f32.mrf.mxu0
        %v323 = vpop.f32.mrf.mxu0
        %v324 = vpop.f32.mrf.mxu0
        %325 = vdwg.mxu0
        %v326 = vmul.f32 %v321, 0.35355338
        %v327 = vlaneseq
        %v328 = vshrl.u32 %v327, 7
        %s329 = smul.u32 %s20, 8
        %v330 = vstv %s329
        %v331 = vadd.s32 %v328, %v330
        %v332 = vlaneseq
        %v333 = vand.u32 %v332, 127
        %v334 = vstv %s270
        %v335 = vadd.s32 %v333, %v334
        %vm336 = vcmp.ge.s32.totalorder %v331, %v335
        %v337 = vsel %vm336, %v326, -1e+30
        %v338 = vld [vmem:[#allocation2] sm:$0xff]
        %v339 = vsel %vm279, %v337, -inf
        %340 = vmax.xlane.f32.xlu0 %v339
        %v341 = vpop.xlane.xlu0 %340
        %v342 = vmax.f32 %v338, %v341
        %v343 = vsub.f32 %v338, %v342
        %v344 = vmul.f32 %v343, 1.442695
        %v345 = vpow.pop %v344
        %347 = vset.pattern.permute.xlu0 0
        %348 = vperm.xlu0 %347, %v342
        %v349 = vpop.permute.xlu0 %348
        %v351 = vsub.f32 %v337, %v349
        %v352 = vmul.f32 %v351, 1.442695
        %v353 = vpow.pop %v352
        %v354 = vld [vmem:[#allocation3] sm:$0xff]
        %v355 = vmul.f32 %v345, %v354
        %v356 = vsel %vm279, %v353, 0.0
        %357 = vadd.xlane.f32.xlu0 %v356
        %v358 = vpop.xlane.xlu0 %357
        %v359 = vadd.f32 %v355, %v358
        %vm360 = vcmask 7168
        %361 = vst.msk [vmem:[#allocation3] sm:$0xff] %vm360, %v359
        %v362 = vld [vmem:[#allocation4] sm:$0xff]
        %364 = vset.pattern.permute.xlu0 0
        %365 = vperm.xlu0 %364, %v345
        %v366 = vpop.permute.xlu0 %365
        %v368 = vmul.f32 %v366, %v362
        %v369 = vpack.c.bf16 %v353, %v353
        %v370 = vld [vmem:[%s252] sm:$0xf]
        %v372 = vsel %vm279, %v369, 0
        %vm374 = vcmask 1043456
        %v376 = vsel %vm374, %v370, 0
        %378 = vmatprep.subr.bf16.mxu0 0
        %379 = vmatpush1.bf16.msra.mxu0 0
        %380 = vmatprep.subr.bf16.mxu0 0
        %381 = vmatpush1.bf16.msra.mxu0 0
        %382 = vmatprep.subr.bf16.mxu0 0
        %383 = vmatpush1.bf16.msra.mxu0 0
        %384 = vmatprep.subr.bf16.mxu0 0
        %385 = vmatpush1.bf16.msra.mxu0 0
        %386 = vmatprep.subr.bf16.mxu0 0
        %387 = vmatpush1.bf16.msra.mxu0 0
        %388 = vmatprep.subr.bf16.mxu0 0
        %389 = vmatpush1.bf16.msra.mxu0 0
        %390 = vmatprep.subr.bf16.mxu0 0
        %391 = vmatpush1.bf16.msra.mxu0 0
        %392 = vmatprep.subr.bf16.mxu0 0
        %393 = vmatpush1.bf16.msra.mxu0 %v376
        %394 = vmatprep.subr.bf16.mxu0 0
        %395 = vmatpush2.bf16.msra.mxu0 0
        %396 = vmatprep.subr.bf16.mxu0 0
        %397 = vmatpush2.bf16.msra.mxu0 0
        %398 = vmatprep.subr.bf16.mxu0 0
        %399 = vmatpush2.bf16.msra.mxu0 0
        %400 = vmatprep.subr.bf16.mxu0 0
        %401 = vmatpush2.bf16.msra.mxu0 0
        %402 = vmatprep.subr.bf16.mxu0 0
        %403 = vmatpush2.bf16.msra.mxu0 0
        %404 = vmatprep.subr.bf16.mxu0 0
        %405 = vmatpush2.bf16.msra.mxu0 0
        %406 = vmatprep.subr.bf16.mxu0 0
        %407 = vmatpush2.bf16.msra.mxu0 0
        %408 = vmatprep.subr.bf16.mxu0 0
        %409 = vmatpush2.bf16.msra.mxu0 0
        %410 = vmatprep.mubr.bf16.mxu0 0
        %411 = vmatmul.mubr.bf16.gmra.mxu0 %v372
        %v412 = vpop.f32.mrf.mxu0
        %v413 = vadd.f32 0.0, %v412
        %v414 = vpop.f32.mrf.mxu0
        %v415 = vpop.f32.mrf.mxu0
        %v416 = vpop.f32.mrf.mxu0
        %417 = vdwg.mxu0
        %v418 = vadd.f32 %v368, %v413
        %419 = vst.msk [vmem:[#allocation4] sm:$0xff] %vm279, %v418
        %420 = vst.msk [vmem:[#allocation2] sm:$0xff] %vm360, %v342
      $region40: #{_lambda_.18} parent=31 // pred_fallthru
        _
      // Predicated region
      $region41: #{_lambda_.18} parent=31 // pred_check
        %p421 = pneg %p261
      $region42: #{_lambda_.18} parent=31 // pred_check_branch
        %423 = sbr.rel (%p421) target = $region44
      $region43: #{_lambda_.18} parent=31 // pred_region
        %v424 = vld [vmem:[#allocation3] sm:$0xff]
        %v425 = vrcp.pop %v424
        %v426 = vld [vmem:[#allocation4] sm:$0xff]
        %428 = vset.pattern.permute.xlu0 0
        %429 = vperm.xlu0 %428, %v425
        %v430 = vpop.permute.xlu0 %429
        %v432 = vmul.f32 %v426, %v430
        %v433 = vpack.c.bf16 %v432, %v432
        %vm434 = vcmask 60416
        %435 = vst.msk [vmem:[%s259] sm:$0xf] %vm434, %v433
      $region44: #{_lambda_.18} parent=31 // pred_fallthru
        _
      %p436 = scmp.lt.s32.totalorder %s19, 7
      %s437 = scalar_select %p436, %s19, 7
      %p438 = scmp.lt.s32.totalorder %s20, 0
      %s439 = scalar_select %p438, %s20, 0
      %s440 = sadd.s32 %s439, %s437
      %s441 = smul.addr %s440, 4
      %s442 = scalar_lea.vmem %s3, %s441
      // Predicated region
      $region45: #{_lambda_.18} parent=31 // pred_check
        %p443 = pneg %p137
      $region46: #{_lambda_.18} parent=31 // pred_check_branch
        %445 = sbr.rel (%p443) target = $region48
      $region47: #{_lambda_.18} parent=31 // pred_region
        _
      $region48: #{_lambda_.18} parent=31 // pred_fallthru
        _
    $region32: #{_lambda_.18} parent=5 // pred_fallthru
      _
    %p446 = scmp.le.s32.totalorder 2, %s9
    // Predicated region
    $region49: #{_lambda_.18} parent=5 // pred_check
      %p447 = pneg %p446
    $region50: #{_lambda_.18} parent=5 // pred_check_branch
      %449 = sbr.rel (%p447) target = $region52
    $region51: #{_lambda_.18} parent=5 // pred_region
      %s450 = ssub.s32 %s9, 2
      // Predicated region
      $region53: #{_lambda_.18} parent=51 // pred_check
        %p451 = pneg %p143
      $region54: #{_lambda_.18} parent=51 // pred_check_branch
        %453 = sbr.rel (%p451) target = $region56
      $region55: #{_lambda_.18} parent=51 // pred_region
        %p454 = scmp.lt.s32.totalorder %s22, 7
        %s455 = scalar_select %p454, %s22, 7
        %p456 = scmp.lt.s32.totalorder %s23, 0
        %s457 = scalar_select %p456, %s23, 0
        %s458 = sadd.s32 %s457, %s455
        %s459 = smul.addr %s458, 4
        %s460 = scalar_lea.vmem %s3, %s459
      $region56: #{_lambda_.18} parent=51 // pred_fallthru
        _
    $region52: #{_lambda_.18} parent=5 // pred_fallthru
      _
  $region6: #{_lambda_.18} parent=0 // loop_footer
    %s13 = sadd.s32 1, %s9
  $region7: #{_lambda_.18} parent=0 // loop_footer_branch
    %8 = sbr.rel target = $region3
  $region8: #{_lambda_.18} parent=0 // loop_exit
    _

// kernel: _lambda_.19
$region0: #{_lambda_.19}
  #allocation0 [shape = 'u32[]', space=smem, size = 0x4, offset = 0x4, fixed_abs, tag = 'smem constant byte address 0x4 - core index']
  #allocation1 [shape = 'u32[144,128]{1,0:T(1,128)}', space=vmem, size = 0x12000, scoped, tag = 'internal scratch']
  #allocation2 [shape = 'f32[16,32]{1,0:T(8,128)}', space=vmem, size = 0x2000, scoped, tag = 'scratch operand']
  %s0 = inlined_call_operand.vmem [shape: bf16[16,32], index: 0, kind: input, shape index: {}]
  %s1 = inlined_call_operand.vmem [shape: bf16[32,32], index: 1, kind: input, shape index: {}]
  %s2 = inlined_call_operand.vmem [shape: bf16[16,32], index: 2, kind: input, shape index: {}, may-alias: {2,3}]
  %s3 = inlined_call_operand.vmem [shape: bf16[16,32], index: 3, kind: output, shape index: {}, may-alias: {2,3}]
  %s4 = sld [smem:[#allocation0]]
  $region30: #{_lambda_.19} parent=0
    _
  %s6 = ssub.s32 1, %s4
  %s7 = scalar_select 0, %s6, %s4
  // Predicated region
  $region2: #{_lambda_.19} parent=0 // pred_check
    _
  $region3: #{_lambda_.19} parent=0 // pred_check_branch
    %9 = sbr.rel (0) target = $region5
  $region4: #{_lambda_.19} parent=0 // pred_region
    _
  $region5: #{_lambda_.19} parent=0 // pred_fallthru
    _
  // Predicated region
  $region6: #{_lambda_.19} parent=0 // pred_check
    _
  $region7: #{_lambda_.19} parent=0 // pred_check_branch
    %11 = sbr.rel (0) target = $region9
  $region8: #{_lambda_.19} parent=0 // pred_region
    _
  $region9: #{_lambda_.19} parent=0 // pred_fallthru
    _
  // Predicated region
  $region10: #{_lambda_.19} parent=0 // pred_check
    _
  $region11: #{_lambda_.19} parent=0 // pred_check_branch
    %13 = sbr.rel (0) target = $region13
  $region12: #{_lambda_.19} parent=0 // pred_region
    _
  $region13: #{_lambda_.19} parent=0 // pred_fallthru
    _
  %p15 = scmp.eq.s32.totalorder 0, 0
  // Predicated region
  $region14: #{_lambda_.19} parent=0 // pred_check
    %p16 = pneg %p15
  $region15: #{_lambda_.19} parent=0 // pred_check_branch
    %18 = sbr.rel (%p16) target = $region17
  $region16: #{_lambda_.19} parent=0 // pred_region
    %vm19 = vcmask 261120
    %20 = vst.msk [vmem:[#allocation2] sm:$0xff] %vm19, 0.0
    %21 = vst.msk [vmem:[#allocation2 + $0x8] sm:$0xff] %vm19, 0.0
  $region17: #{_lambda_.19} parent=0 // pred_fallthru
    _
  %v22 = vld [vmem:[#allocation2] sm:$0xff]
  %v23 = vld [vmem:[#allocation2 + $0x8] sm:$0xff]
  %v24 = vld [vmem:[%s0] sm:$0xf]
  %v25 = vld [vmem:[%s0 + $0x4] sm:$0xf]
  %v26 = vld [vmem:[%s1] sm:$0xf]
  %v27 = vld [vmem:[%s1 + $0x4] sm:$0xf]
  %v28 = vld [vmem:[%s1 + $0x8] sm:$0xf]
  %v29 = vld [vmem:[%s1 + $0xc] sm:$0xf]
  %v32 = vunpack.c.l.b16 %v24
  %v33 = vunpack.c.l.b16 %v25
  %v34 = vpack.c.b16 %v33, %v32
  %v39 = vunpack.c.l.b16 %v26
  %v40 = vunpack.c.l.b16 %v27
  %v41 = vunpack.c.l.b16 %v28
  %v42 = vunpack.c.l.b16 %v29
  %v43 = vpack.c.b16 %v40, %v39
  %v44 = vpack.c.b16 %v42, %v41
  %vm47 = vcmask 261120
  %v49 = vsel %vm47, %v34, 0
  %51 = vmatprep.subr.bf16.mxu0 0
  %52 = vmatpush1.bf16.msra.mxu0 0
  %53 = vmatprep.subr.bf16.mxu0 0
  %54 = vmatpush1.bf16.msra.mxu0 0
  %55 = vmatprep.subr.bf16.mxu0 0
  %56 = vmatpush1.bf16.msra.mxu0 0
  %57 = vmatprep.subr.bf16.mxu0 0
  %58 = vmatpush1.bf16.msra.mxu0 0
  %59 = vmatprep.subr.bf16.mxu0 0
  %60 = vmatpush1.bf16.msra.mxu0 0
  %61 = vmatprep.subr.bf16.mxu0 0
  %62 = vmatpush1.bf16.msra.mxu0 0
  %63 = vmatprep.subr.bf16.mxu0 0
  %64 = vmatpush1.bf16.msra.mxu0 %v44
  %65 = vmatprep.subr.bf16.mxu0 0
  %66 = vmatpush1.bf16.msra.mxu0 %v43
  %67 = vmatprep.subr.bf16.mxu0 0
  %68 = vmatpush2.bf16.msra.mxu0 0
  %69 = vmatprep.subr.bf16.mxu0 0
  %70 = vmatpush2.bf16.msra.mxu0 0
  %71 = vmatprep.subr.bf16.mxu0 0
  %72 = vmatpush2.bf16.msra.mxu0 0
  %73 = vmatprep.subr.bf16.mxu0 0
  %74 = vmatpush2.bf16.msra.mxu0 0
  %75 = vmatprep.subr.bf16.mxu0 0
  %76 = vmatpush2.bf16.msra.mxu0 0
  %77 = vmatprep.subr.bf16.mxu0 0
  %78 = vmatpush2.bf16.msra.mxu0 0
  %79 = vmatprep.subr.bf16.mxu0 0
  %80 = vmatpush2.bf16.msra.mxu0 0
  %81 = vmatprep.subr.bf16.mxu0 0
  %82 = vmatpush2.bf16.msra.mxu0 0
  %83 = vmatprep.mubr.bf16.mxu0 0
  %84 = vmatmul.mubr.bf16.gmra.mxu0 %v49
  %v85 = vpop.f32.mrf.mxu0
  %v86 = vadd.f32 0.0, %v85
  %v87 = vpop.f32.mrf.mxu0
  %v88 = vpop.f32.mrf.mxu0
  %v89 = vadd.f32 0.0, %v88
  %v90 = vpop.f32.mrf.mxu0
  %91 = vdwg.mxu0
  %v92 = vadd.f32 %v22, %v86
  %v93 = vadd.f32 %v23, %v89
  %94 = vst.msk [vmem:[#allocation2] sm:$0xff] %vm47, %v92
  %95 = vst.msk [vmem:[#allocation2 + $0x8] sm:$0xff] %vm47, %v93
  // Predicated region
  $region18: #{_lambda_.19} parent=0 // pred_check
    %p96 = pneg %p15
  $region19: #{_lambda_.19} parent=0 // pred_check_branch
    %98 = sbr.rel (%p96) target = $region21
  $region20: #{_lambda_.19} parent=0 // pred_region
    %v99 = vld [vmem:[%s2] sm:$0xf]
    %v100 = vld [vmem:[%s2 + $0x4] sm:$0xf]
    %v101 = vunpack.c.l.bf16 %v99
    %v102 = vunpack.c.l.bf16 %v100
    %v103 = vld [vmem:[#allocation2] sm:$0xff]
    %v104 = vld [vmem:[#allocation2 + $0x8] sm:$0xff]
    %v105 = vadd.f32 %v101, %v103
    %v106 = vadd.f32 %v102, %v104
    %v107 = vpack.c.bf16 %v106, %v105
    %v109 = vunpack.c.l.b16 %v107
    %v110 = vunpack.c.h.b16 %v107
    %v111 = vpack.c.b16 %v109, %v109
    %v112 = vpack.c.b16 %v110, %v110
    %vm115 = vcmask 257024
    %116 = vst.msk [vmem:[%s3] sm:$0xf] %vm115, %v111
    %117 = vst.msk [vmem:[%s3 + $0x4] sm:$0xf] %vm115, %v112
  $region21: #{_lambda_.19} parent=0 // pred_fallthru
    _
  // Predicated region
  $region22: #{_lambda_.19} parent=0 // pred_check
    _
  $region23: #{_lambda_.19} parent=0 // pred_check_branch
    %119 = sbr.rel (0) target = $region25
  $region24: #{_lambda_.19} parent=0 // pred_region
    _
  $region25: #{_lambda_.19} parent=0 // pred_fallthru
    _
  // Predicated region
  $region26: #{_lambda_.19} parent=0 // pred_check
    _
  $region27: #{_lambda_.19} parent=0 // pred_check_branch
    %121 = sbr.rel (0) target = $region29
  $region28: #{_lambda_.19} parent=0 // pred_region
    _
  $region29: #{_lambda_.19} parent=0 // pred_fallthru
    _

// kernel: _lambda_.20
$region0: #{_lambda_.20}
  #allocation0 [shape = 'u32[]', space=smem, size = 0x4, offset = 0x4, fixed_abs, tag = 'smem constant byte address 0x4 - core index']
  #allocation1 [shape = 'u32[144,128]{1,0:T(1,128)}', space=vmem, size = 0x12000, scoped, tag = 'internal scratch']
  %s0 = inlined_call_operand.vmem [shape: bf16[16,32], index: 0, kind: input, shape index: {}]
  %s1 = inlined_call_operand.vmem [shape: f32[1,32], index: 1, kind: input, shape index: {}]
  %s2 = inlined_call_operand.vmem [shape: bf16[32,512], index: 2, kind: input, shape index: {}]
  %s3 = inlined_call_operand.vmem [shape: bf16[16,512], index: 3, kind: output, shape index: {}]
  %s4 = sld [smem:[#allocation0]]
  $region22: #{_lambda_.20} parent=0
    _
  %s6 = ssub.s32 1, %s4
  %s7 = scalar_select 0, %s6, %s4
  // Predicated region
  $region2: #{_lambda_.20} parent=0 // pred_check
    _
  $region3: #{_lambda_.20} parent=0 // pred_check_branch
    %9 = sbr.rel (0) target = $region5
  $region4: #{_lambda_.20} parent=0 // pred_region
    _
  $region5: #{_lambda_.20} parent=0 // pred_fallthru
    _
  // Predicated region
  $region6: #{_lambda_.20} parent=0 // pred_check
    _
  $region7: #{_lambda_.20} parent=0 // pred_check_branch
    %11 = sbr.rel (0) target = $region9
  $region8: #{_lambda_.20} parent=0 // pred_region
    _
  $region9: #{_lambda_.20} parent=0 // pred_fallthru
    _
  // Predicated region
  $region10: #{_lambda_.20} parent=0 // pred_check
    _
  $region11: #{_lambda_.20} parent=0 // pred_check_branch
    %13 = sbr.rel (0) target = $region13
  $region12: #{_lambda_.20} parent=0 // pred_region
    _
  $region13: #{_lambda_.20} parent=0 // pred_fallthru
    _
  %v15 = vld [vmem:[%s0] sm:$0xf]
  %v16 = vld [vmem:[%s0 + $0x4] sm:$0xf]
  %v17 = vunpack.c.l.bf16 %v15
  %v18 = vunpack.c.l.bf16 %v16
  %v19 = vmul.f32 %v17, %v17
  %v20 = vmul.f32 %v18, %v18
  %vm21 = vcmask 261120
  %v22 = vsel %vm21, %v19, 0.0
  %23 = vadd.xlane.f32.xlu0 %v22
  %v24 = vpop.xlane.xlu0 %23
  %v25 = vsel %vm21, %v20, 0.0
  %26 = vadd.xlane.f32.xlu0 %v25
  %v27 = vpop.xlane.xlu0 %26
  %v28 = vrcp.pop 32.0
  %v29 = vmul.f32 %v24, %v28
  %v30 = vmul.f32 %v27, %v28
  %v31 = vadd.f32 %v29, 1e-05
  %v32 = vadd.f32 %v30, 1e-05
  %v33 = vrsqrt.pop %v31
  %v34 = vrsqrt.pop %v32
  %v35 = vmul.f32 %v17, %v33
  %v36 = vmul.f32 %v18, %v34
  %v37 = vld [vmem:[%s1] sm:$0x1]
  %v39 = vlaneseq
  %v40 = vshrl.u32 %v39, 7
  %v41 = vsub.s32 0, %v40
  %v42 = vrot.slane %v37, %v41
  %v44 = vmul.f32 %v35, %v42
  %v45 = vmul.f32 %v36, %v42
  %v46 = vpack.c.bf16 %v45, %v44
  %v47 = vld [vmem:[%s2] sm:$0xff]
  %v48 = vld [vmem:[%s2 + $0x8] sm:$0xff]
  %v49 = vld [vmem:[%s2 + $0x10] sm:$0xff]
  %v50 = vld [vmem:[%s2 + $0x18] sm:$0xff]
  %v51 = vld [vmem:[%s2 + $0x20] sm:$0xff]
  %v52 = vld [vmem:[%s2 + $0x28] sm:$0xff]
  %v53 = vld [vmem:[%s2 + $0x30] sm:$0xff]
  %v54 = vld [vmem:[%s2 + $0x38] sm:$0xff]
  %v63 = vunpack.c.l.b16 %v47
  %v64 = vunpack.c.h.b16 %v47
  %v65 = vunpack.c.l.b16 %v48
  %v66 = vunpack.c.h.b16 %v48
  %v67 = vunpack.c.l.b16 %v49
  %v68 = vunpack.c.h.b16 %v49
  %v69 = vunpack.c.l.b16 %v50
  %v70 = vunpack.c.h.b16 %v50
  %v71 = vunpack.c.l.b16 %v51
  %v72 = vunpack.c.h.b16 %v51
  %v73 = vunpack.c.l.b16 %v52
  %v74 = vunpack.c.h.b16 %v52
  %v75 = vunpack.c.l.b16 %v53
  %v76 = vunpack.c.h.b16 %v53
  %v77 = vunpack.c.l.b16 %v54
  %v78 = vunpack.c.h.b16 %v54
  %v79 = vpack.c.b16 %v67, %v63
  %v80 = vpack.c.b16 %v68, %v64
  %v81 = vpack.c.b16 %v69, %v65
  %v82 = vpack.c.b16 %v70, %v66
  %v83 = vpack.c.b16 %v75, %v71
  %v84 = vpack.c.b16 %v76, %v72
  %v85 = vpack.c.b16 %v77, %v73
  %v86 = vpack.c.b16 %v78, %v74
  %v96 = vsel %vm21, %v46, 0
  %98 = vmatprep.subr.bf16.mxu0 0
  %99 = vmatpush1.bf16.msra.mxu0 0
  %100 = vmatprep.subr.bf16.mxu0 0
  %101 = vmatpush1.bf16.msra.mxu0 0
  %102 = vmatprep.subr.bf16.mxu0 0
  %103 = vmatpush1.bf16.msra.mxu0 0
  %104 = vmatprep.subr.bf16.mxu0 0
  %105 = vmatpush1.bf16.msra.mxu0 0
  %106 = vmatprep.subr.bf16.mxu0 0
  %107 = vmatpush1.bf16.msra.mxu0 0
  %108 = vmatprep.subr.bf16.mxu0 0
  %109 = vmatpush1.bf16.msra.mxu0 0
  %110 = vmatprep.subr.bf16.mxu0 %v84
  %111 = vmatpush1.bf16.msra.mxu0 %v83
  %112 = vmatprep.subr.bf16.mxu0 %v80
  %113 = vmatpush1.bf16.msra.mxu0 %v79
  %114 = vmatprep.subr.bf16.mxu0 0
  %115 = vmatpush2.bf16.msra.mxu0 0
  %116 = vmatprep.subr.bf16.mxu0 0
  %117 = vmatpush2.bf16.msra.mxu0 0
  %118 = vmatprep.subr.bf16.mxu0 0
  %119 = vmatpush2.bf16.msra.mxu0 0
  %120 = vmatprep.subr.bf16.mxu0 0
  %121 = vmatpush2.bf16.msra.mxu0 0
  %122 = vmatprep.subr.bf16.mxu0 0
  %123 = vmatpush2.bf16.msra.mxu0 0
  %124 = vmatprep.subr.bf16.mxu0 0
  %125 = vmatpush2.bf16.msra.mxu0 0
  %126 = vmatprep.subr.bf16.mxu0 0
  %127 = vmatpush2.bf16.msra.mxu0 0
  %128 = vmatprep.subr.bf16.mxu0 0
  %129 = vmatpush2.bf16.msra.mxu0 0
  %130 = vmatprep.mubr.bf16.mxu0 0
  %131 = vmatmul.mubr.bf16.gmra.mxu0 %v96
  %v132 = vpop.f32.mrf.mxu0
  %v133 = vadd.f32 0.0, %v132
  %v134 = vpop.f32.mrf.mxu0
  %v135 = vadd.f32 0.0, %v134
  %v136 = vpop.f32.mrf.mxu0
  %v137 = vadd.f32 0.0, %v136
  %v138 = vpop.f32.mrf.mxu0
  %v139 = vadd.f32 0.0, %v138
  %140 = vdwg.mxu0
  %141 = vmatprep.subr.bf16.mxu0 0
  %142 = vmatpush1.bf16.msra.mxu0 0
  %143 = vmatprep.subr.bf16.mxu0 0
  %144 = vmatpush1.bf16.msra.mxu0 0
  %145 = vmatprep.subr.bf16.mxu0 0
  %146 = vmatpush1.bf16.msra.mxu0 0
  %147 = vmatprep.subr.bf16.mxu0 0
  %148 = vmatpush1.bf16.msra.mxu0 0
  %149 = vmatprep.subr.bf16.mxu0 0
  %150 = vmatpush1.bf16.msra.mxu0 0
  %151 = vmatprep.subr.bf16.mxu0 0
  %152 = vmatpush1.bf16.msra.mxu0 0
  %153 = vmatprep.subr.bf16.mxu0 %v86
  %154 = vmatpush1.bf16.msra.mxu0 %v85
  %155 = vmatprep.subr.bf16.mxu0 %v82
  %156 = vmatpush1.bf16.msra.mxu0 %v81
  %157 = vmatprep.subr.bf16.mxu0 0
  %158 = vmatpush2.bf16.msra.mxu0 0
  %159 = vmatprep.subr.bf16.mxu0 0
  %160 = vmatpush2.bf16.msra.mxu0 0
  %161 = vmatprep.subr.bf16.mxu0 0
  %162 = vmatpush2.bf16.msra.mxu0 0
  %163 = vmatprep.subr.bf16.mxu0 0
  %164 = vmatpush2.bf16.msra.mxu0 0
  %165 = vmatprep.subr.bf16.mxu0 0
  %166 = vmatpush2.bf16.msra.mxu0 0
  %167 = vmatprep.subr.bf16.mxu0 0
  %168 = vmatpush2.bf16.msra.mxu0 0
  %169 = vmatprep.subr.bf16.mxu0 0
  %170 = vmatpush2.bf16.msra.mxu0 0
  %171 = vmatprep.subr.bf16.mxu0 0
  %172 = vmatpush2.bf16.msra.mxu0 0
  %173 = vmatprep.mubr.bf16.mxu0 0
  %174 = vmatmul.mubr.bf16.gmra.mxu0 %v96
  %v175 = vpop.f32.mrf.mxu0
  %v176 = vadd.f32 0.0, %v175
  %v177 = vpop.f32.mrf.mxu0
  %v178 = vadd.f32 0.0, %v177
  %v179 = vpop.f32.mrf.mxu0
  %v180 = vadd.f32 0.0, %v179
  %v181 = vpop.f32.mrf.mxu0
  %v182 = vadd.f32 0.0, %v181
  %183 = vdwg.mxu0
  %v184 = vpack.c.bf16 %v137, %v133
  %v185 = vpack.c.bf16 %v139, %v135
  %v186 = vpack.c.bf16 %v180, %v176
  %v187 = vpack.c.bf16 %v182, %v178
  %v192 = vunpack.c.l.b16 %v184
  %v193 = vunpack.c.l.b16 %v185
  %v194 = vunpack.c.l.b16 %v186
  %v195 = vunpack.c.l.b16 %v187
  %v196 = vunpack.c.h.b16 %v184
  %v197 = vunpack.c.h.b16 %v185
  %v198 = vunpack.c.h.b16 %v186
  %v199 = vunpack.c.h.b16 %v187
  %v200 = vpack.c.b16 %v193, %v192
  %v201 = vpack.c.b16 %v195, %v194
  %v202 = vpack.c.b16 %v197, %v196
  %v203 = vpack.c.b16 %v199, %v198
  %208 = vst [vmem:[%s3] sm:$0xff] %v200
  %209 = vst [vmem:[%s3 + $0x8] sm:$0xff] %v201
  %210 = vst [vmem:[%s3 + $0x10] sm:$0xff] %v202
  %211 = vst [vmem:[%s3 + $0x18] sm:$0xff] %v203
  // Predicated region
  $region14: #{_lambda_.20} parent=0 // pred_check
    _
  $region15: #{_lambda_.20} parent=0 // pred_check_branch
    %213 = sbr.rel (0) target = $region17
  $region16: #{_lambda_.20} parent=0 // pred_region
    _
  $region17: #{_lambda_.20} parent=0 // pred_fallthru
    _
  // Predicated region
  $region18: #{_lambda_.20} parent=0 // pred_check
    _
  $region19: #{_lambda_.20} parent=0 // pred_check_branch
    %215 = sbr.rel (0) target = $region21
  $region20: #{_lambda_.20} parent=0 // pred_region
    _
  $region21: #{_lambda_.20} parent=0 // pred_fallthru
    _

// kernel: _lambda_.21
$region0: #{_lambda_.21}
  #allocation0 [shape = 'u32[]', space=smem, size = 0x4, offset = 0x4, fixed_abs, tag = 'smem constant byte address 0x4 - core index']
  #allocation1 [shape = 'u32[144,128]{1,0:T(1,128)}', space=vmem, size = 0x12000, scoped, tag = 'internal scratch']
  #allocation2 [shape = 'f32[16,32]{1,0:T(8,128)}', space=vmem, size = 0x2000, scoped, tag = 'scratch operand']
  %s0 = inlined_call_operand.vmem [shape: bf16[16,512], index: 0, kind: input, shape index: {}, may-alias: {0,1}]
  %s1 = inlined_call_operand.vmem [shape: bf16[16,512], index: 1, kind: input, shape index: {}, may-alias: {0,1}]
  %s2 = inlined_call_operand.vmem [shape: bf16[256,32], index: 2, kind: input, shape index: {}]
  %s3 = inlined_call_operand.vmem [shape: bf16[16,32], index: 3, kind: input, shape index: {}, may-alias: {3,4}]
  %s4 = inlined_call_operand.vmem [shape: bf16[16,32], index: 4, kind: output, shape index: {}, may-alias: {3,4}]
  %s5 = sld [smem:[#allocation0]]
  $region110: #{_lambda_.21} parent=0
    _
  %s7 = ssub.s32 1, %s5
  %s8 = scalar_select 0, %s7, %s5
  $region1: #{_lambda_.21} parent=0
    #allocation3 [shape = 'u8[8192]{0}', space=vmem, size = 0x2000, scoped, tag = 'input window, operand 0, single buffered']
    #allocation4 [shape = 'u8[8192]{0}', space=vmem, size = 0x2000, scoped, tag = 'input window, operand 1, single buffered']
    // Predicated region
    $region2: #{_lambda_.21} parent=1 // pred_check
      _
    $region3: #{_lambda_.21} parent=1 // pred_check_branch
      %10 = sbr.rel (0) target = $region5
    $region4: #{_lambda_.21} parent=1 // pred_region
      // Predicated region
      $region6: #{_lambda_.21} parent=4 // pred_check
        _
      $region7: #{_lambda_.21} parent=4 // pred_check_branch
        %12 = sbr.rel (0) target = $region9
      $region8: #{_lambda_.21} parent=4 // pred_region
        // Predicated region
        $region10: #{_lambda_.21} parent=8 // pred_check
          _
        $region11: #{_lambda_.21} parent=8 // pred_check_branch
          %14 = sbr.rel (0) target = $region13
        $region12: #{_lambda_.21} parent=8 // pred_region
          // Predicated region
          $region25: #{_lambda_.21} parent=12 // pred_check
            _
          $region26: #{_lambda_.21} parent=12 // pred_check_branch
            %32 = sbr.rel (0) target = $region28
          $region27: #{_lambda_.21} parent=12 // pred_region
            loop: start=0, step=1, limit=1
            $region29: #{_lambda_.21} parent=27 // loop_pre_header
              _
            $region30: #{_lambda_.21} parent=27 // loop_header
              %s34 = sphi 0, %s38
              %p35 = scmp.ge.s32.totalorder %s34, 1
              %s39 = sphi %s0, %s0
              %s40 = sphi [#allocation3], [#allocation3]
            $region31: #{_lambda_.21} parent=27 // loop_header_branch
              %37 = sbr.rel (%p35) target = $region35
            $region32: #{_lambda_.21} parent=27 // loop_body
              %v41 = vld [vmem:[%s39] sm:$0xff]
              %42 = vst [vmem:[%s40] sm:$0xff] %v41
              %v43 = vld [vmem:[%s39 + $0x10] sm:$0xff]
              %44 = vst [vmem:[%s40 + $0x8] sm:$0xff] %v43
            $region33: #{_lambda_.21} parent=27 // loop_footer
              %s38 = sadd.s32 1, %s34
            $region34: #{_lambda_.21} parent=27 // loop_footer_branch
              %33 = sbr.rel target = $region30
            $region35: #{_lambda_.21} parent=27 // loop_exit
              _
          $region28: #{_lambda_.21} parent=12 // pred_fallthru
            _
          // Predicated region
          $region36: #{_lambda_.21} parent=12 // pred_check
            _
          $region37: #{_lambda_.21} parent=12 // pred_check_branch
            %46 = sbr.rel target = $region39
          $region38: #{_lambda_.21} parent=12 // pred_region
            _
          $region39: #{_lambda_.21} parent=12 // pred_fallthru
            _
        $region13: #{_lambda_.21} parent=8 // pred_fallthru
          _
        // Predicated region
        $region14: #{_lambda_.21} parent=8 // pred_check
          _
        $region15: #{_lambda_.21} parent=8 // pred_check_branch
          %16 = sbr.rel target = $region17
        $region16: #{_lambda_.21} parent=8 // pred_region
          %s18 = ssub.s32 256, 1
          loop: start=0, step=1, limit=1
          $region18: #{_lambda_.21} parent=16 // loop_pre_header
            _
          $region19: #{_lambda_.21} parent=16 // loop_header
            %s20 = sphi 0, %s24
            %p21 = scmp.ge.s32.totalorder %s20, 1
            %s25 = sphi %s0, %s0
            %s26 = sphi [#allocation3], [#allocation3]
          $region20: #{_lambda_.21} parent=16 // loop_header_branch
            %23 = sbr.rel (%p21) target = $region24
          $region21: #{_lambda_.21} parent=16 // loop_body
            %v27 = vld [vmem:[%s25] sm:%s18]
            %28 = vst [vmem:[%s26] sm:%s18] %v27
            %v29 = vld [vmem:[%s25 + $0x10] sm:%s18]
            %30 = vst [vmem:[%s26 + $0x8] sm:%s18] %v29
          $region22: #{_lambda_.21} parent=16 // loop_footer
            %s24 = sadd.s32 1, %s20
          $region23: #{_lambda_.21} parent=16 // loop_footer_branch
            %19 = sbr.rel target = $region19
          $region24: #{_lambda_.21} parent=16 // loop_exit
            _
        $region17: #{_lambda_.21} parent=8 // pred_fallthru
          _
      $region9: #{_lambda_.21} parent=4 // pred_fallthru
        _
      %47 = vnop
    $region5: #{_lambda_.21} parent=1 // pred_fallthru
      _
    // Predicated region
    $region40: #{_lambda_.21} parent=1 // pred_check
      _
    $region41: #{_lambda_.21} parent=1 // pred_check_branch
      %49 = sbr.rel (0) target = $region43
    $region42: #{_lambda_.21} parent=1 // pred_region
      %s50 = sadd.s32 0, 1
      %s51 = smul.u32 2, %s50
      %s52 = smul.addr %s51, 4
      %s53 = scalar_lea.vmem %s1, %s52
      // Predicated region
      $region44: #{_lambda_.21} parent=42 // pred_check
        _
      $region45: #{_lambda_.21} parent=42 // pred_check_branch
        %55 = sbr.rel (0) target = $region47
      $region46: #{_lambda_.21} parent=42 // pred_region
        // Predicated region
        $region48: #{_lambda_.21} parent=46 // pred_check
          _
        $region49: #{_lambda_.21} parent=46 // pred_check_branch
          %57 = sbr.rel (0) target = $region51
        $region50: #{_lambda_.21} parent=46 // pred_region
          // Predicated region
          $region63: #{_lambda_.21} parent=50 // pred_check
            _
          $region64: #{_lambda_.21} parent=50 // pred_check_branch
            %75 = sbr.rel (0) target = $region66
          $region65: #{_lambda_.21} parent=50 // pred_region
            loop: start=0, step=1, limit=1
            $region67: #{_lambda_.21} parent=65 // loop_pre_header
              _
            $region68: #{_lambda_.21} parent=65 // loop_header
              %s77 = sphi 0, %s81
              %p78 = scmp.ge.s32.totalorder %s77, 1
              %s82 = sphi %s53, %s53
              %s83 = sphi [#allocation4], [#allocation4]
            $region69: #{_lambda_.21} parent=65 // loop_header_branch
              %80 = sbr.rel (%p78) target = $region73
            $region70: #{_lambda_.21} parent=65 // loop_body
              %v84 = vld [vmem:[%s82] sm:$0xff]
              %85 = vst [vmem:[%s83] sm:$0xff] %v84
              %v86 = vld [vmem:[%s82 + $0x10] sm:$0xff]
              %87 = vst [vmem:[%s83 + $0x8] sm:$0xff] %v86
            $region71: #{_lambda_.21} parent=65 // loop_footer
              %s81 = sadd.s32 1, %s77
            $region72: #{_lambda_.21} parent=65 // loop_footer_branch
              %76 = sbr.rel target = $region68
            $region73: #{_lambda_.21} parent=65 // loop_exit
              _
          $region66: #{_lambda_.21} parent=50 // pred_fallthru
            _
          // Predicated region
          $region74: #{_lambda_.21} parent=50 // pred_check
            _
          $region75: #{_lambda_.21} parent=50 // pred_check_branch
            %89 = sbr.rel target = $region77
          $region76: #{_lambda_.21} parent=50 // pred_region
            _
          $region77: #{_lambda_.21} parent=50 // pred_fallthru
            _
        $region51: #{_lambda_.21} parent=46 // pred_fallthru
          _
        // Predicated region
        $region52: #{_lambda_.21} parent=46 // pred_check
          _
        $region53: #{_lambda_.21} parent=46 // pred_check_branch
          %59 = sbr.rel target = $region55
        $region54: #{_lambda_.21} parent=46 // pred_region
          %s61 = ssub.s32 256, 1
          loop: start=0, step=1, limit=1
          $region56: #{_lambda_.21} parent=54 // loop_pre_header
            _
          $region57: #{_lambda_.21} parent=54 // loop_header
            %s63 = sphi 0, %s67
            %p64 = scmp.ge.s32.totalorder %s63, 1
            %s68 = sphi %s53, %s53
            %s69 = sphi [#allocation4], [#allocation4]
          $region58: #{_lambda_.21} parent=54 // loop_header_branch
            %66 = sbr.rel (%p64) target = $region62
          $region59: #{_lambda_.21} parent=54 // loop_body
            %v70 = vld [vmem:[%s68] sm:%s61]
            %71 = vst [vmem:[%s69] sm:%s61] %v70
            %v72 = vld [vmem:[%s68 + $0x10] sm:%s61]
            %73 = vst [vmem:[%s69 + $0x8] sm:%s61] %v72
          $region60: #{_lambda_.21} parent=54 // loop_footer
            %s67 = sadd.s32 1, %s63
          $region61: #{_lambda_.21} parent=54 // loop_footer_branch
            %62 = sbr.rel target = $region57
          $region62: #{_lambda_.21} parent=54 // loop_exit
            _
        $region55: #{_lambda_.21} parent=46 // pred_fallthru
          _
      $region47: #{_lambda_.21} parent=42 // pred_fallthru
        _
      %90 = vnop
    $region43: #{_lambda_.21} parent=1 // pred_fallthru
      _
    // Predicated region
    $region78: #{_lambda_.21} parent=1 // pred_check
      _
    $region79: #{_lambda_.21} parent=1 // pred_check_branch
      %92 = sbr.rel (0) target = $region81
    $region80: #{_lambda_.21} parent=1 // pred_region
      _
    $region81: #{_lambda_.21} parent=1 // pred_fallthru
      _
    // Predicated region
    $region82: #{_lambda_.21} parent=1 // pred_check
      _
    $region83: #{_lambda_.21} parent=1 // pred_check_branch
      %94 = sbr.rel (0) target = $region85
    $region84: #{_lambda_.21} parent=1 // pred_region
      _
    $region85: #{_lambda_.21} parent=1 // pred_fallthru
      _
    // Predicated region
    $region86: #{_lambda_.21} parent=1 // pred_check
      _
    $region87: #{_lambda_.21} parent=1 // pred_check_branch
      %96 = sbr.rel (0) target = $region89
    $region88: #{_lambda_.21} parent=1 // pred_region
      _
    $region89: #{_lambda_.21} parent=1 // pred_fallthru
      _
    // Predicated region
    $region90: #{_lambda_.21} parent=1 // pred_check
      _
    $region91: #{_lambda_.21} parent=1 // pred_check_branch
      %98 = sbr.rel (0) target = $region93
    $region92: #{_lambda_.21} parent=1 // pred_region
      _
    $region93: #{_lambda_.21} parent=1 // pred_fallthru
      _
    %s99 = sadd.s32 0, 1
    %s100 = smul.u32 2, %s99
    %p102 = scmp.eq.s32.totalorder 0, 0
    // Predicated region
    $region94: #{_lambda_.21} parent=1 // pred_check
      %p103 = pneg %p102
    $region95: #{_lambda_.21} parent=1 // pred_check_branch
      %105 = sbr.rel (%p103) target = $region97
    $region96: #{_lambda_.21} parent=1 // pred_region
      %vm106 = vcmask 261120
      %107 = vst.msk [vmem:[#allocation2] sm:$0xff] %vm106, 0.0
      %108 = vst.msk [vmem:[#allocation2 + $0x8] sm:$0xff] %vm106, 0.0
    $region97: #{_lambda_.21} parent=1 // pred_fallthru
      _
    %v109 = vld [vmem:[#allocation3] sm:$0xff]
    %v110 = vld [vmem:[#allocation3 + $0x8] sm:$0xff]
    %v111 = vunpack.c.l.bf16 %v109
    %v112 = vunpack.c.h.bf16 %v109
    %v113 = vunpack.c.l.bf16 %v110
    %v114 = vunpack.c.h.bf16 %v110
    %v115 = vld [vmem:[#allocation4] sm:$0xff]
    %v116 = vld [vmem:[#allocation4 + $0x8] sm:$0xff]
    %v117 = vunpack.c.l.bf16 %v115
    %v118 = vunpack.c.h.bf16 %v115
    %v119 = vunpack.c.l.bf16 %v116
    %v120 = vunpack.c.h.bf16 %v116
    %v121 = vxor.u32 %v111, 2147483648
    %v122 = vxor.u32 %v112, 2147483648
    %v123 = vxor.u32 %v113, 2147483648
    %v124 = vxor.u32 %v114, 2147483648
    %v125 = vmul.f32 %v121, 1.442695
    %v126 = vpow.pop %v125
    %v127 = vmul.f32 %v122, 1.442695
    %v128 = vpow.pop %v127
    %v129 = vmul.f32 %v123, 1.442695
    %v130 = vpow.pop %v129
    %v131 = vmul.f32 %v124, 1.442695
    %v132 = vpow.pop %v131
    %v133 = vadd.f32 %v126, 1.0
    %v134 = vadd.f32 %v128, 1.0
    %v135 = vadd.f32 %v130, 1.0
    %v136 = vadd.f32 %v132, 1.0
    %v137 = vrcp.pop %v133
    %v138 = vmul.f32 1.0, %v137
    %v139 = vrcp.pop %v134
    %v140 = vmul.f32 1.0, %v139
    %v141 = vrcp.pop %v135
    %v142 = vmul.f32 1.0, %v141
    %v143 = vrcp.pop %v136
    %v144 = vmul.f32 1.0, %v143
    %v145 = vmul.f32 %v111, %v138
    %v146 = vmul.f32 %v112, %v140
    %v147 = vmul.f32 %v113, %v142
    %v148 = vmul.f32 %v114, %v144
    %v149 = vmul.f32 %v145, %v117
    %v150 = vmul.f32 %v146, %v118
    %v151 = vmul.f32 %v147, %v119
    %v152 = vmul.f32 %v148, %v120
    %v153 = vpack.c.bf16 %v151, %v149
    %v154 = vpack.c.bf16 %v152, %v150
    %v155 = vld [vmem:[#allocation2] sm:$0xff]
    %v156 = vld [vmem:[#allocation2 + $0x8] sm:$0xff]
    %v157 = vld [vmem:[%s2] sm:$0xf]
    %v158 = vld [vmem:[%s2 + $0x4] sm:$0xf]
    %v159 = vld [vmem:[%s2 + $0x8] sm:$0xf]
    %v160 = vld [vmem:[%s2 + $0xc] sm:$0xf]
    %v161 = vld [vmem:[%s2 + $0x10] sm:$0xf]
    %v162 = vld [vmem:[%s2 + $0x14] sm:$0xf]
    %v163 = vld [vmem:[%s2 + $0x18] sm:$0xf]
    %v164 = vld [vmem:[%s2 + $0x1c] sm:$0xf]
    %v165 = vld [vmem:[%s2 + $0x20] sm:$0xf]
    %v166 = vld [vmem:[%s2 + $0x24] sm:$0xf]
    %v167 = vld [vmem:[%s2 + $0x28] sm:$0xf]
    %v168 = vld [vmem:[%s2 + $0x2c] sm:$0xf]
    %v169 = vld [vmem:[%s2 + $0x30] sm:$0xf]
    %v170 = vld [vmem:[%s2 + $0x34] sm:$0xf]
    %v171 = vld [vmem:[%s2 + $0x38] sm:$0xf]
    %v172 = vld [vmem:[%s2 + $0x3c] sm:$0xf]
    %v173 = vld [vmem:[%s2 + $0x40] sm:$0xf]
    %v174 = vld [vmem:[%s2 + $0x44] sm:$0xf]
    %v175 = vld [vmem:[%s2 + $0x48] sm:$0xf]
    %v176 = vld [vmem:[%s2 + $0x4c] sm:$0xf]
    %v177 = vld [vmem:[%s2 + $0x50] sm:$0xf]
    %v178 = vld [vmem:[%s2 + $0x54] sm:$0xf]
    %v179 = vld [vmem:[%s2 + $0x58] sm:$0xf]
    %v180 = vld [vmem:[%s2 + $0x5c] sm:$0xf]
    %v181 = vld [vmem:[%s2 + $0x60] sm:$0xf]
    %v182 = vld [vmem:[%s2 + $0x64] sm:$0xf]
    %v183 = vld [vmem:[%s2 + $0x68] sm:$0xf]
    %v184 = vld [vmem:[%s2 + $0x6c] sm:$0xf]
    %v185 = vld [vmem:[%s2 + $0x70] sm:$0xf]
    %v186 = vld [vmem:[%s2 + $0x74] sm:$0xf]
    %v187 = vld [vmem:[%s2 + $0x78] sm:$0xf]
    %v188 = vld [vmem:[%s2 + $0x7c] sm:$0xf]
    %v221 = vunpack.c.l.b16 %v157
    %v222 = vunpack.c.l.b16 %v158
    %v223 = vunpack.c.l.b16 %v159
    %v224 = vunpack.c.l.b16 %v160
    %v225 = vunpack.c.l.b16 %v161
    %v226 = vunpack.c.l.b16 %v162
    %v227 = vunpack.c.l.b16 %v163
    %v228 = vunpack.c.l.b16 %v164
    %v229 = vunpack.c.l.b16 %v165
    %v230 = vunpack.c.l.b16 %v166
    %v231 = vunpack.c.l.b16 %v167
    %v232 = vunpack.c.l.b16 %v168
    %v233 = vunpack.c.l.b16 %v169
    %v234 = vunpack.c.l.b16 %v170
    %v235 = vunpack.c.l.b16 %v171
    %v236 = vunpack.c.l.b16 %v172
    %v237 = vunpack.c.l.b16 %v173
    %v238 = vunpack.c.l.b16 %v174
    %v239 = vunpack.c.l.b16 %v175
    %v240 = vunpack.c.l.b16 %v176
    %v241 = vunpack.c.l.b16 %v177
    %v242 = vunpack.c.l.b16 %v178
    %v243 = vunpack.c.l.b16 %v179
    %v244 = vunpack.c.l.b16 %v180
    %v245 = vunpack.c.l.b16 %v181
    %v246 = vunpack.c.l.b16 %v182
    %v247 = vunpack.c.l.b16 %v183
    %v248 = vunpack.c.l.b16 %v184
    %v249 = vunpack.c.l.b16 %v185
    %v250 = vunpack.c.l.b16 %v186
    %v251 = vunpack.c.l.b16 %v187
    %v252 = vunpack.c.l.b16 %v188
    %v253 = vpack.c.b16 %v222, %v221
    %v254 = vpack.c.b16 %v224, %v223
    %v255 = vpack.c.b16 %v226, %v225
    %v256 = vpack.c.b16 %v228, %v227
    %v257 = vpack.c.b16 %v230, %v229
    %v258 = vpack.c.b16 %v232, %v231
    %v259 = vpack.c.b16 %v234, %v233
    %v260 = vpack.c.b16 %v236, %v235
    %v261 = vpack.c.b16 %v238, %v237
    %v262 = vpack.c.b16 %v240, %v239
    %v263 = vpack.c.b16 %v242, %v241
    %v264 = vpack.c.b16 %v244, %v243
    %v265 = vpack.c.b16 %v246, %v245
    %v266 = vpack.c.b16 %v248, %v247
    %v267 = vpack.c.b16 %v250, %v249
    %v268 = vpack.c.b16 %v252, %v251
    %285 = vmatprep.subr.bf16.mxu0 0
    %286 = vmatpush1.bf16.msra.mxu0 %v260
    %287 = vmatprep.subr.bf16.mxu0 0
    %288 = vmatpush1.bf16.msra.mxu0 %v259
    %289 = vmatprep.subr.bf16.mxu0 0
    %290 = vmatpush1.bf16.msra.mxu0 %v258
    %291 = vmatprep.subr.bf16.mxu0 0
    %292 = vmatpush1.bf16.msra.mxu0 %v257
    %293 = vmatprep.subr.bf16.mxu0 0
    %294 = vmatpush1.bf16.msra.mxu0 %v256
    %295 = vmatprep.subr.bf16.mxu0 0
    %296 = vmatpush1.bf16.msra.mxu0 %v255
    %297 = vmatprep.subr.bf16.mxu0 0
    %298 = vmatpush1.bf16.msra.mxu0 %v254
    %299 = vmatprep.subr.bf16.mxu0 0
    %300 = vmatpush1.bf16.msra.mxu0 %v253
    %301 = vmatprep.subr.bf16.mxu0 0
    %302 = vmatpush2.bf16.msra.mxu0 %v268
    %303 = vmatprep.subr.bf16.mxu0 0
    %304 = vmatpush2.bf16.msra.mxu0 %v267
    %305 = vmatprep.subr.bf16.mxu0 0
    %306 = vmatpush2.bf16.msra.mxu0 %v266
    %307 = vmatprep.subr.bf16.mxu0 0
    %308 = vmatpush2.bf16.msra.mxu0 %v265
    %309 = vmatprep.subr.bf16.mxu0 0
    %310 = vmatpush2.bf16.msra.mxu0 %v264
    %311 = vmatprep.subr.bf16.mxu0 0
    %312 = vmatpush2.bf16.msra.mxu0 %v263
    %313 = vmatprep.subr.bf16.mxu0 0
    %314 = vmatpush2.bf16.msra.mxu0 %v262
    %315 = vmatprep.subr.bf16.mxu0 0
    %316 = vmatpush2.bf16.msra.mxu0 %v261
    %317 = vmatprep.mubr.bf16.mxu0 %v154
    %318 = vmatmul.mubr.bf16.gmra.mxu0 %v153
    %v319 = vpop.f32.mrf.mxu0
    %v320 = vadd.f32 0.0, %v319
    %v321 = vpop.f32.mrf.mxu0
    %v322 = vpop.f32.mrf.mxu0
    %v323 = vadd.f32 0.0, %v322
    %v324 = vpop.f32.mrf.mxu0
    %325 = vdwg.mxu0
    %v326 = vadd.f32 %v155, %v320
    %v327 = vadd.f32 %v156, %v323
    %vm328 = vcmask 261120
    %329 = vst.msk [vmem:[#allocation2] sm:$0xff] %vm328, %v326
    %330 = vst.msk [vmem:[#allocation2 + $0x8] sm:$0xff] %vm328, %v327
    // Predicated region
    $region98: #{_lambda_.21} parent=1 // pred_check
      %p331 = pneg %p102
    $region99: #{_lambda_.21} parent=1 // pred_check_branch
      %333 = sbr.rel (%p331) target = $region101
    $region100: #{_lambda_.21} parent=1 // pred_region
      %v334 = vld [vmem:[%s3] sm:$0xf]
      %v335 = vld [vmem:[%s3 + $0x4] sm:$0xf]
      %v336 = vunpack.c.l.bf16 %v334
      %v337 = vunpack.c.l.bf16 %v335
      %v338 = vld [vmem:[#allocation2] sm:$0xff]
      %v339 = vld [vmem:[#allocation2 + $0x8] sm:$0xff]
      %v340 = vadd.f32 %v336, %v338
      %v341 = vadd.f32 %v337, %v339
      %v342 = vpack.c.bf16 %v341, %v340
      %v344 = vunpack.c.l.b16 %v342
      %v345 = vunpack.c.h.b16 %v342
      %v346 = vpack.c.b16 %v344, %v344
      %v347 = vpack.c.b16 %v345, %v345
      %vm350 = vcmask 257024
      %351 = vst.msk [vmem:[%s4] sm:$0xf] %vm350, %v346
      %352 = vst.msk [vmem:[%s4 + $0x4] sm:$0xf] %vm350, %v347
    $region101: #{_lambda_.21} parent=1 // pred_fallthru
      _
    // Predicated region
    $region102: #{_lambda_.21} parent=1 // pred_check
      _
    $region103: #{_lambda_.21} parent=1 // pred_check_branch
      %354 = sbr.rel (0) target = $region105
    $region104: #{_lambda_.21} parent=1 // pred_region
      _
    $region105: #{_lambda_.21} parent=1 // pred_fallthru
      _
    // Predicated region
    $region106: #{_lambda_.21} parent=1 // pred_check
      _
    $region107: #{_lambda_.21} parent=1 // pred_check_branch
      %356 = sbr.rel (0) target = $region109
    $region108: #{_lambda_.21} parent=1 // pred_region
      _
    $region109: #{_lambda_.21} parent=1 // pred_fallthru
      _

// kernel: _lambda_.29
$region0: #{_lambda_.29}
  #allocation0 [shape = 'u32[]', space=smem, size = 0x4, offset = 0x4, fixed_abs, tag = 'smem constant byte address 0x4 - core index']
  #allocation1 [shape = 'u32[144,128]{1,0:T(1,128)}', space=vmem, size = 0x12000, scoped, tag = 'internal scratch']
  %s0 = inlined_call_operand.vmem [shape: bf16[8,32], index: 0, kind: input, shape index: {}]
  %s1 = inlined_call_operand.vmem [shape: f32[1,32], index: 1, kind: input, shape index: {}]
  %s2 = inlined_call_operand.vmem [shape: bf16[32,64], index: 2, kind: input, shape index: {}]
  %s3 = inlined_call_operand.vmem [shape: f32[8,64], index: 3, kind: output, shape index: {}]
  %s4 = sld [smem:[#allocation0]]
  $region22: #{_lambda_.29} parent=0
    _
  %s6 = ssub.s32 1, %s4
  %s7 = scalar_select 0, %s6, %s4
  // Predicated region
  $region2: #{_lambda_.29} parent=0 // pred_check
    _
  $region3: #{_lambda_.29} parent=0 // pred_check_branch
    %9 = sbr.rel (0) target = $region5
  $region4: #{_lambda_.29} parent=0 // pred_region
    _
  $region5: #{_lambda_.29} parent=0 // pred_fallthru
    _
  // Predicated region
  $region6: #{_lambda_.29} parent=0 // pred_check
    _
  $region7: #{_lambda_.29} parent=0 // pred_check_branch
    %11 = sbr.rel (0) target = $region9
  $region8: #{_lambda_.29} parent=0 // pred_region
    _
  $region9: #{_lambda_.29} parent=0 // pred_fallthru
    _
  // Predicated region
  $region10: #{_lambda_.29} parent=0 // pred_check
    _
  $region11: #{_lambda_.29} parent=0 // pred_check_branch
    %13 = sbr.rel (0) target = $region13
  $region12: #{_lambda_.29} parent=0 // pred_region
    _
  $region13: #{_lambda_.29} parent=0 // pred_fallthru
    _
  %v15 = vld [vmem:[%s0] sm:$0xf]
  %v16 = vunpack.c.l.bf16 %v15
  %v17 = vmul.f32 %v16, %v16
  %vm18 = vcmask 261120
  %v19 = vsel %vm18, %v17, 0.0
  %20 = vadd.xlane.f32.xlu0 %v19
  %v21 = vpop.xlane.xlu0 %20
  %v22 = vrcp.pop 32.0
  %v23 = vmul.f32 %v21, %v22
  %v24 = vadd.f32 %v23, 1e-05
  %v25 = vrsqrt.pop %v24
  %v26 = vmul.f32 %v16, %v25
  %v27 = vld [vmem:[%s1] sm:$0x1]
  %v29 = vlaneseq
  %v30 = vshrl.u32 %v29, 7
  %v31 = vsub.s32 0, %v30
  %v32 = vrot.slane %v27, %v31
  %v34 = vmul.f32 %v26, %v32
  %v35 = vpack.c.bf16 %v34, %v34
  %v36 = vld [vmem:[%s2] sm:$0xf]
  %v37 = vld [vmem:[%s2 + $0x4] sm:$0xf]
  %v38 = vld [vmem:[%s2 + $0x8] sm:$0xf]
  %v39 = vld [vmem:[%s2 + $0xc] sm:$0xf]
  %v44 = vunpack.c.l.b16 %v36
  %v45 = vunpack.c.l.b16 %v37
  %v46 = vunpack.c.l.b16 %v38
  %v47 = vunpack.c.l.b16 %v39
  %v48 = vpack.c.b16 %v45, %v44
  %v49 = vpack.c.b16 %v47, %v46
  %v53 = vsel %vm18, %v35, 0
  %55 = vmatprep.subr.bf16.mxu0 0
  %56 = vmatpush1.bf16.msra.mxu0 0
  %57 = vmatprep.subr.bf16.mxu0 0
  %58 = vmatpush1.bf16.msra.mxu0 0
  %59 = vmatprep.subr.bf16.mxu0 0
  %60 = vmatpush1.bf16.msra.mxu0 0
  %61 = vmatprep.subr.bf16.mxu0 0
  %62 = vmatpush1.bf16.msra.mxu0 0
  %63 = vmatprep.subr.bf16.mxu0 0
  %64 = vmatpush1.bf16.msra.mxu0 0
  %65 = vmatprep.subr.bf16.mxu0 0
  %66 = vmatpush1.bf16.msra.mxu0 0
  %67 = vmatprep.subr.bf16.mxu0 0
  %68 = vmatpush1.bf16.msra.mxu0 %v49
  %69 = vmatprep.subr.bf16.mxu0 0
  %70 = vmatpush1.bf16.msra.mxu0 %v48
  %71 = vmatprep.subr.bf16.mxu0 0
  %72 = vmatpush2.bf16.msra.mxu0 0
  %73 = vmatprep.subr.bf16.mxu0 0
  %74 = vmatpush2.bf16.msra.mxu0 0
  %75 = vmatprep.subr.bf16.mxu0 0
  %76 = vmatpush2.bf16.msra.mxu0 0
  %77 = vmatprep.subr.bf16.mxu0 0
  %78 = vmatpush2.bf16.msra.mxu0 0
  %79 = vmatprep.subr.bf16.mxu0 0
  %80 = vmatpush2.bf16.msra.mxu0 0
  %81 = vmatprep.subr.bf16.mxu0 0
  %82 = vmatpush2.bf16.msra.mxu0 0
  %83 = vmatprep.subr.bf16.mxu0 0
  %84 = vmatpush2.bf16.msra.mxu0 0
  %85 = vmatprep.subr.bf16.mxu0 0
  %86 = vmatpush2.bf16.msra.mxu0 0
  %87 = vmatprep.mubr.bf16.mxu0 0
  %88 = vmatmul.mubr.bf16.gmra.mxu0 %v53
  %v89 = vpop.f32.mrf.mxu0
  %v90 = vadd.f32 0.0, %v89
  %v91 = vpop.f32.mrf.mxu0
  %v92 = vpop.f32.mrf.mxu0
  %v93 = vpop.f32.mrf.mxu0
  %94 = vdwg.mxu0
  %vm95 = vcmask 523264
  %96 = vst.msk [vmem:[%s3] sm:$0xff] %vm95, %v90
  // Predicated region
  $region14: #{_lambda_.29} parent=0 // pred_check
    _
  $region15: #{_lambda_.29} parent=0 // pred_check_branch
    %98 = sbr.rel (0) target = $region17
  $region16: #{_lambda_.29} parent=0 // pred_region
    _
  $region17: #{_lambda_.29} parent=0 // pred_fallthru
    _
  // Predicated region
  $region18: #{_lambda_.29} parent=0 // pred_check
    _
  $region19: #{_lambda_.29} parent=0 // pred_check_branch
    %100 = sbr.rel (0) target = $region21
  $region20: #{_lambda_.29} parent=0 // pred_region
    _
  $region21: #{_lambda_.29} parent=0 // pred_fallthru
    _

</llo_original>
